<compile_context>
chip_gen: v7x
topology: tpu7x:2x2x1
jax: 0.10.0
libtpu: 0.0.40
codegen_flags: <defaults>
</compile_context>

<pallas_src>
import jax
import jax.numpy as jnp
import numpy as np
from jax import lax
from jax.experimental import pallas as pl
from jax.experimental.pallas import tpu as pltpu


def _round_up(x, m):
    return ((x + m - 1) // m) * m


# ----------------------------- Pallas kernel -------------------------------

def rnn_kernel(ids_ref, proj_ref, w_hh_t_ref, w_fc_t_ref, b_fc_ref, out_ref):
    """Whole-sequence RNN forward in a single invocation.

    ids_ref:    (T, B_pad)      int32 token ids, time-major, SMEM
    proj_ref:   (V_pad, H_pad)  emb @ W_ih^T + (b_ih + b_hh), lane-padded, VMEM
    w_hh_t_ref: (H_pad, H_pad)  hidden->hidden weight (pre-transposed, zero-padded)
    w_fc_t_ref: (H_pad, O_pad)  final linear weight (pre-transposed, zero-padded)
    b_fc_ref:   (1, O_pad)      final linear bias (lane-padded)
    out_ref:    (B_pad, O_pad)  FC output on the last hidden state
    """
    n_steps, b_pad = ids_ref.shape
    h_pad = w_hh_t_ref.shape[1]

    # Load W_hh^T once; it stays vreg/MXU resident across every serial step.
    w_hh_t = w_hh_t_ref[...]

    def step(t, h):
        # Gather the pre-projected rows (x_t @ W_ih^T + bias) for all batch
        # elements of this timestep straight out of the VMEM-resident table.
        # These gathers do not depend on h, so they sit off the serial
        # matmul -> add -> tanh critical path.
        rows = [proj_ref[pl.ds(ids_ref[t, b], 1), :] for b in range(b_pad)]
        x_t = jnp.concatenate(rows, axis=0)                    # (B_pad, H_pad)
        return jnp.tanh(
            x_t + jnp.dot(h, w_hh_t, preferred_element_type=jnp.float32))

    h0 = jnp.zeros((b_pad, h_pad), jnp.float32)
    # Cap unroll so long sequences don't inflate vreg live ranges / spill.
    h_last = lax.fori_loop(0, n_steps, step, h0, unroll=min(int(n_steps), 8))

    out_ref[...] = (
        jnp.dot(h_last, w_fc_t_ref[...], preferred_element_type=jnp.float32)
        + b_fc_ref[...]
    ).astype(out_ref.dtype)


# ------------------------- one-time weight preparation ----------------------

def prepare_params(params):
    """Init-time prep: fuse embedding + input projection + biases, pre-transpose
    the recurrence/FC weights and zero-pad everything to lane/sublane-dense
    shapes.  Called once; nothing here runs per forward call."""
    emb_table = params["emb_table"]                      # (V, E)
    w_ih, w_hh = params["w_ih"], params["w_hh"]          # (H, E), (H, H)
    b_ih, b_hh = params["b_ih"], params["b_hh"]          # (H,), (H,)
    w_fc, b_fc = params["w_fc"], params["b_fc"]          # (O, H), (O,)

    V = emb_table.shape[0]
    H = w_hh.shape[0]
    O = w_fc.shape[0]
    V_pad = _round_up(V, 8)
    H_pad = max(128, _round_up(H, 128))
    O_pad = max(128, _round_up(O, 128))

    # proj_table[v] = emb[v] @ W_ih^T + (b_ih + b_hh); padded rows/cols zero.
    proj = emb_table @ w_ih.T + (b_ih + b_hh)[None, :]   # (V, H)
    proj_table = jnp.zeros((V_pad, H_pad), jnp.float32).at[:V, :H].set(proj)
    w_hh_t = jnp.zeros((H_pad, H_pad), jnp.float32).at[:H, :H].set(w_hh.T)
    w_fc_t = jnp.zeros((H_pad, O_pad), jnp.float32).at[:H, :O].set(w_fc.T)
    b_fc_2d = jnp.zeros((1, O_pad), jnp.float32).at[:, :O].set(b_fc[None, :])

    # Padded H columns stay exactly zero through the recurrence: xproj pad
    # cols are 0, W_hh^T pad rows/cols are 0, and tanh(0) == 0.
    return dict(proj_table=proj_table, w_hh_t=w_hh_t, w_fc_t=w_fc_t,
                b_fc_2d=b_fc_2d, O=O, O_pad=O_pad)


# --------------------------------- wrapper ----------------------------------

def rnn_forward_pallas(x_ids, prep):
    """x_ids: (B, T) int32 token ids.  Returns (B, output_size) f32."""
    B, T = x_ids.shape
    B_pad = max(8, _round_up(B, 8))
    O, O_pad = prep["O"], prep["O_pad"]

    # Padded batch rows use token id 0 (in-vocab); their rows are sliced off.
    x_pad = jnp.pad(x_ids, ((0, B_pad - B), (0, 0)))
    ids_tm = jnp.transpose(x_pad, (1, 0)).astype(jnp.int32)     # (T, B_pad)

    smem = pl.BlockSpec(memory_space=pltpu.MemorySpace.SMEM)
    vmem = pl.BlockSpec(memory_space=pltpu.MemorySpace.VMEM)

    out = pl.pallas_call(
        rnn_kernel,
        out_shape=jax.ShapeDtypeStruct((B_pad, O_pad), jnp.float32),
        in_specs=[smem, vmem, vmem, vmem, vmem],
        out_specs=vmem,
    )(ids_tm, prep["proj_table"], prep["w_hh_t"], prep["w_fc_t"],
      prep["b_fc_2d"])

    return out[:B, :O]


# --------------------------- pure-JAX reference -----------------------------

def rnn_forward_ref(x_ids, params):
    emb = jnp.take(params["emb_table"], x_ids, axis=0)        # (B, T, E)
    B = x_ids.shape[0]
    H = params["w_hh"].shape[0]
    h = jnp.zeros((B, H), jnp.float32)

    def step(h, x_t):
        h_new = jnp.tanh(x_t @ params["w_ih"].T + params["b_ih"]
                         + h @ params["w_hh"].T + params["b_hh"])
        return h_new, None

    h_last, _ = lax.scan(step, h, jnp.transpose(emb, (1, 0, 2)))
    return h_last @ params["w_fc"].T + params["b_fc"]


# ------------------------------- param init ---------------------------------

def init_params(vocab_size, emb_size, padding_idx, output_size, hidden_size):
    key = jax.random.PRNGKey(0)
    ks = jax.random.split(key, 7)
    # nn.Embedding: N(0,1), padding row zeroed.
    emb_table = jax.random.normal(ks[0], (vocab_size, emb_size), jnp.float32)
    emb_table = emb_table.at[padding_idx].set(0.0)
    # nn.RNN: uniform(-1/sqrt(H), 1/sqrt(H))
    bound_rnn = 1.0 / np.sqrt(hidden_size)
    w_ih = jax.random.uniform(ks[1], (hidden_size, emb_size), jnp.float32,
                              -bound_rnn, bound_rnn)
    w_hh = jax.random.uniform(ks[2], (hidden_size, hidden_size), jnp.float32,
                              -bound_rnn, bound_rnn)
    b_ih = jax.random.uniform(ks[3], (hidden_size,), jnp.float32,
                              -bound_rnn, bound_rnn)
    b_hh = jax.random.uniform(ks[4], (hidden_size,), jnp.float32,
                              -bound_rnn, bound_rnn)
    # nn.Linear: uniform(-1/sqrt(H), 1/sqrt(H))
    bound_fc = 1.0 / np.sqrt(hidden_size)
    w_fc = jax.random.uniform(ks[5], (output_size, hidden_size), jnp.float32,
                              -bound_fc, bound_fc)
    b_fc = jax.random.uniform(ks[6], (output_size,), jnp.float32,
                              -bound_fc, bound_fc)
    return dict(emb_table=emb_table, w_ih=w_ih, w_hh=w_hh,
                b_ih=b_ih, b_hh=b_hh, w_fc=w_fc, b_fc=b_fc)


# ---------------------------------- main -------------------------------------

if __name__ == "__main__":
    VOCAB, EMB, PAD_IDX, OUT, HIDDEN = 20, 32, 0, 4, 32
    B, T = 2, 8

    params = init_params(VOCAB, EMB, PAD_IDX, OUT, HIDDEN)
    prep = prepare_params(params)           # one-time weight prep

    key = jax.random.PRNGKey(0)
    x_ids = jax.random.randint(key, (B, T), 0, VOCAB, dtype=jnp.int32)

    out = rnn_forward_pallas(x_ids, prep)
    out = jax.block_until_ready(out)

    ref = rnn_forward_ref(x_ids, params)
    np.testing.assert_allclose(np.asarray(out), np.asarray(ref),
                               rtol=1e-5, atol=1e-5)
    print("KERNEL_OK")
</pallas_src>

<mosaic_0001>
module attributes {stable_mosaic.version = 11 : i64} {
  func.func @rnn_kernel(%arg0: memref<8x8xi32, #tpu.memory_space<smem>>, %arg1: memref<24x128xf32, #tpu.memory_space<vmem>>, %arg2: memref<128x128xf32, #tpu.memory_space<vmem>>, %arg3: memref<128x128xf32, #tpu.memory_space<vmem>>, %arg4: memref<1x128xf32, #tpu.memory_space<vmem>>, %arg5: memref<8x128xf32, #tpu.memory_space<vmem>>) attributes {dimension_semantics = [], scalar_prefetch = 0 : i64, scratch_operands = 0 : i64, tpu.core_type = #tpu.core_type<tc>} {
    %c0 = arith.constant 0 : index
    %c0_0 = arith.constant 0 : index
    %0 = vector.load %arg2[%c0, %c0_0] : memref<128x128xf32, #tpu.memory_space<vmem>>, vector<128x128xf32>
    %cst = arith.constant 0.000000e+00 : f32
    %1 = vector.broadcast %cst : f32 to vector<8x128xf32>
    %c0_i32 = arith.constant 0 : i32
    %2 = arith.index_cast %c0_i32 : i32 to index
    %c0_1 = arith.constant 0 : index
    %3 = memref.load %arg0[%2, %c0_1] : memref<8x8xi32, #tpu.memory_space<smem>>
    %4 = arith.index_cast %3 : i32 to index
    %c0_2 = arith.constant 0 : index
    %5 = vector.load %arg1[%4, %c0_2] : memref<24x128xf32, #tpu.memory_space<vmem>>, vector<1x128xf32>
    %6 = arith.index_cast %c0_i32 : i32 to index
    %c1 = arith.constant 1 : index
    %7 = memref.load %arg0[%6, %c1] : memref<8x8xi32, #tpu.memory_space<smem>>
    %8 = arith.index_cast %7 : i32 to index
    %c0_3 = arith.constant 0 : index
    %9 = vector.load %arg1[%8, %c0_3] : memref<24x128xf32, #tpu.memory_space<vmem>>, vector<1x128xf32>
    %10 = arith.index_cast %c0_i32 : i32 to index
    %c2 = arith.constant 2 : index
    %11 = memref.load %arg0[%10, %c2] : memref<8x8xi32, #tpu.memory_space<smem>>
    %12 = arith.index_cast %11 : i32 to index
    %c0_4 = arith.constant 0 : index
    %13 = vector.load %arg1[%12, %c0_4] : memref<24x128xf32, #tpu.memory_space<vmem>>, vector<1x128xf32>
    %14 = arith.index_cast %c0_i32 : i32 to index
    %c3 = arith.constant 3 : index
    %15 = memref.load %arg0[%14, %c3] : memref<8x8xi32, #tpu.memory_space<smem>>
    %16 = arith.index_cast %15 : i32 to index
    %c0_5 = arith.constant 0 : index
    %17 = vector.load %arg1[%16, %c0_5] : memref<24x128xf32, #tpu.memory_space<vmem>>, vector<1x128xf32>
    %18 = arith.index_cast %c0_i32 : i32 to index
    %c4 = arith.constant 4 : index
    %19 = memref.load %arg0[%18, %c4] : memref<8x8xi32, #tpu.memory_space<smem>>
    %20 = arith.index_cast %19 : i32 to index
    %c0_6 = arith.constant 0 : index
    %21 = vector.load %arg1[%20, %c0_6] : memref<24x128xf32, #tpu.memory_space<vmem>>, vector<1x128xf32>
    %22 = arith.index_cast %c0_i32 : i32 to index
    %c5 = arith.constant 5 : index
    %23 = memref.load %arg0[%22, %c5] : memref<8x8xi32, #tpu.memory_space<smem>>
    %24 = arith.index_cast %23 : i32 to index
    %c0_7 = arith.constant 0 : index
    %25 = vector.load %arg1[%24, %c0_7] : memref<24x128xf32, #tpu.memory_space<vmem>>, vector<1x128xf32>
    %26 = arith.index_cast %c0_i32 : i32 to index
    %c6 = arith.constant 6 : index
    %27 = memref.load %arg0[%26, %c6] : memref<8x8xi32, #tpu.memory_space<smem>>
    %28 = arith.index_cast %27 : i32 to index
    %c0_8 = arith.constant 0 : index
    %29 = vector.load %arg1[%28, %c0_8] : memref<24x128xf32, #tpu.memory_space<vmem>>, vector<1x128xf32>
    %30 = arith.index_cast %c0_i32 : i32 to index
    %c7 = arith.constant 7 : index
    %31 = memref.load %arg0[%30, %c7] : memref<8x8xi32, #tpu.memory_space<smem>>
    %32 = arith.index_cast %31 : i32 to index
    %c0_9 = arith.constant 0 : index
    %33 = vector.load %arg1[%32, %c0_9] : memref<24x128xf32, #tpu.memory_space<vmem>>, vector<1x128xf32>
    %34 = tpu.concatenate %5, %9, %13, %17, %21, %25, %29, %33 in 0 : vector<1x128xf32>, vector<1x128xf32>, vector<1x128xf32>, vector<1x128xf32>, vector<1x128xf32>, vector<1x128xf32>, vector<1x128xf32>, vector<1x128xf32> -> vector<8x128xf32>
    %cst_10 = arith.constant dense<0.000000e+00> : vector<8x128xf32>
    %35 = tpu.matmul %1, %0, %cst_10 {dimension_numbers = #tpu.dot_dimension_numbers<[1], [0], [0], [1], [0, 0, 1, 1], [], []>} : vector<8x128xf32>, vector<128x128xf32>, vector<8x128xf32> -> vector<8x128xf32>
    %36 = arith.addf %34, %35 : vector<8x128xf32>
    %37 = math.tanh %36 : vector<8x128xf32>
    %c1_i32 = arith.constant 1 : i32
    %38 = arith.index_cast %c1_i32 : i32 to index
    %c0_11 = arith.constant 0 : index
    %39 = memref.load %arg0[%38, %c0_11] : memref<8x8xi32, #tpu.memory_space<smem>>
    %40 = arith.index_cast %39 : i32 to index
    %c0_12 = arith.constant 0 : index
    %41 = vector.load %arg1[%40, %c0_12] : memref<24x128xf32, #tpu.memory_space<vmem>>, vector<1x128xf32>
    %42 = arith.index_cast %c1_i32 : i32 to index
    %c1_13 = arith.constant 1 : index
    %43 = memref.load %arg0[%42, %c1_13] : memref<8x8xi32, #tpu.memory_space<smem>>
    %44 = arith.index_cast %43 : i32 to index
    %c0_14 = arith.constant 0 : index
    %45 = vector.load %arg1[%44, %c0_14] : memref<24x128xf32, #tpu.memory_space<vmem>>, vector<1x128xf32>
    %46 = arith.index_cast %c1_i32 : i32 to index
    %c2_15 = arith.constant 2 : index
    %47 = memref.load %arg0[%46, %c2_15] : memref<8x8xi32, #tpu.memory_space<smem>>
    %48 = arith.index_cast %47 : i32 to index
    %c0_16 = arith.constant 0 : index
    %49 = vector.load %arg1[%48, %c0_16] : memref<24x128xf32, #tpu.memory_space<vmem>>, vector<1x128xf32>
    %50 = arith.index_cast %c1_i32 : i32 to index
    %c3_17 = arith.constant 3 : index
    %51 = memref.load %arg0[%50, %c3_17] : memref<8x8xi32, #tpu.memory_space<smem>>
    %52 = arith.index_cast %51 : i32 to index
    %c0_18 = arith.constant 0 : index
    %53 = vector.load %arg1[%52, %c0_18] : memref<24x128xf32, #tpu.memory_space<vmem>>, vector<1x128xf32>
    %54 = arith.index_cast %c1_i32 : i32 to index
    %c4_19 = arith.constant 4 : index
    %55 = memref.load %arg0[%54, %c4_19] : memref<8x8xi32, #tpu.memory_space<smem>>
    %56 = arith.index_cast %55 : i32 to index
    %c0_20 = arith.constant 0 : index
    %57 = vector.load %arg1[%56, %c0_20] : memref<24x128xf32, #tpu.memory_space<vmem>>, vector<1x128xf32>
    %58 = arith.index_cast %c1_i32 : i32 to index
    %c5_21 = arith.constant 5 : index
    %59 = memref.load %arg0[%58, %c5_21] : memref<8x8xi32, #tpu.memory_space<smem>>
    %60 = arith.index_cast %59 : i32 to index
    %c0_22 = arith.constant 0 : index
    %61 = vector.load %arg1[%60, %c0_22] : memref<24x128xf32, #tpu.memory_space<vmem>>, vector<1x128xf32>
    %62 = arith.index_cast %c1_i32 : i32 to index
    %c6_23 = arith.constant 6 : index
    %63 = memref.load %arg0[%62, %c6_23] : memref<8x8xi32, #tpu.memory_space<smem>>
    %64 = arith.index_cast %63 : i32 to index
    %c0_24 = arith.constant 0 : index
    %65 = vector.load %arg1[%64, %c0_24] : memref<24x128xf32, #tpu.memory_space<vmem>>, vector<1x128xf32>
    %66 = arith.index_cast %c1_i32 : i32 to index
    %c7_25 = arith.constant 7 : index
    %67 = memref.load %arg0[%66, %c7_25] : memref<8x8xi32, #tpu.memory_space<smem>>
    %68 = arith.index_cast %67 : i32 to index
    %c0_26 = arith.constant 0 : index
    %69 = vector.load %arg1[%68, %c0_26] : memref<24x128xf32, #tpu.memory_space<vmem>>, vector<1x128xf32>
    %70 = tpu.concatenate %41, %45, %49, %53, %57, %61, %65, %69 in 0 : vector<1x128xf32>, vector<1x128xf32>, vector<1x128xf32>, vector<1x128xf32>, vector<1x128xf32>, vector<1x128xf32>, vector<1x128xf32>, vector<1x128xf32> -> vector<8x128xf32>
    %cst_27 = arith.constant dense<0.000000e+00> : vector<8x128xf32>
    %71 = tpu.matmul %37, %0, %cst_27 {dimension_numbers = #tpu.dot_dimension_numbers<[1], [0], [0], [1], [0, 0, 1, 1], [], []>} : vector<8x128xf32>, vector<128x128xf32>, vector<8x128xf32> -> vector<8x128xf32>
    %72 = arith.addf %70, %71 : vector<8x128xf32>
    %73 = math.tanh %72 : vector<8x128xf32>
    %c2_i32 = arith.constant 2 : i32
    %74 = arith.index_cast %c2_i32 : i32 to index
    %c0_28 = arith.constant 0 : index
    %75 = memref.load %arg0[%74, %c0_28] : memref<8x8xi32, #tpu.memory_space<smem>>
    %76 = arith.index_cast %75 : i32 to index
    %c0_29 = arith.constant 0 : index
    %77 = vector.load %arg1[%76, %c0_29] : memref<24x128xf32, #tpu.memory_space<vmem>>, vector<1x128xf32>
    %78 = arith.index_cast %c2_i32 : i32 to index
    %c1_30 = arith.constant 1 : index
    %79 = memref.load %arg0[%78, %c1_30] : memref<8x8xi32, #tpu.memory_space<smem>>
    %80 = arith.index_cast %79 : i32 to index
    %c0_31 = arith.constant 0 : index
    %81 = vector.load %arg1[%80, %c0_31] : memref<24x128xf32, #tpu.memory_space<vmem>>, vector<1x128xf32>
    %82 = arith.index_cast %c2_i32 : i32 to index
    %c2_32 = arith.constant 2 : index
    %83 = memref.load %arg0[%82, %c2_32] : memref<8x8xi32, #tpu.memory_space<smem>>
    %84 = arith.index_cast %83 : i32 to index
    %c0_33 = arith.constant 0 : index
    %85 = vector.load %arg1[%84, %c0_33] : memref<24x128xf32, #tpu.memory_space<vmem>>, vector<1x128xf32>
    %86 = arith.index_cast %c2_i32 : i32 to index
    %c3_34 = arith.constant 3 : index
    %87 = memref.load %arg0[%86, %c3_34] : memref<8x8xi32, #tpu.memory_space<smem>>
    %88 = arith.index_cast %87 : i32 to index
    %c0_35 = arith.constant 0 : index
    %89 = vector.load %arg1[%88, %c0_35] : memref<24x128xf32, #tpu.memory_space<vmem>>, vector<1x128xf32>
    %90 = arith.index_cast %c2_i32 : i32 to index
    %c4_36 = arith.constant 4 : index
    %91 = memref.load %arg0[%90, %c4_36] : memref<8x8xi32, #tpu.memory_space<smem>>
    %92 = arith.index_cast %91 : i32 to index
    %c0_37 = arith.constant 0 : index
    %93 = vector.load %arg1[%92, %c0_37] : memref<24x128xf32, #tpu.memory_space<vmem>>, vector<1x128xf32>
    %94 = arith.index_cast %c2_i32 : i32 to index
    %c5_38 = arith.constant 5 : index
    %95 = memref.load %arg0[%94, %c5_38] : memref<8x8xi32, #tpu.memory_space<smem>>
    %96 = arith.index_cast %95 : i32 to index
    %c0_39 = arith.constant 0 : index
    %97 = vector.load %arg1[%96, %c0_39] : memref<24x128xf32, #tpu.memory_space<vmem>>, vector<1x128xf32>
    %98 = arith.index_cast %c2_i32 : i32 to index
    %c6_40 = arith.constant 6 : index
    %99 = memref.load %arg0[%98, %c6_40] : memref<8x8xi32, #tpu.memory_space<smem>>
    %100 = arith.index_cast %99 : i32 to index
    %c0_41 = arith.constant 0 : index
    %101 = vector.load %arg1[%100, %c0_41] : memref<24x128xf32, #tpu.memory_space<vmem>>, vector<1x128xf32>
    %102 = arith.index_cast %c2_i32 : i32 to index
    %c7_42 = arith.constant 7 : index
    %103 = memref.load %arg0[%102, %c7_42] : memref<8x8xi32, #tpu.memory_space<smem>>
    %104 = arith.index_cast %103 : i32 to index
    %c0_43 = arith.constant 0 : index
    %105 = vector.load %arg1[%104, %c0_43] : memref<24x128xf32, #tpu.memory_space<vmem>>, vector<1x128xf32>
    %106 = tpu.concatenate %77, %81, %85, %89, %93, %97, %101, %105 in 0 : vector<1x128xf32>, vector<1x128xf32>, vector<1x128xf32>, vector<1x128xf32>, vector<1x128xf32>, vector<1x128xf32>, vector<1x128xf32>, vector<1x128xf32> -> vector<8x128xf32>
    %cst_44 = arith.constant dense<0.000000e+00> : vector<8x128xf32>
    %107 = tpu.matmul %73, %0, %cst_44 {dimension_numbers = #tpu.dot_dimension_numbers<[1], [0], [0], [1], [0, 0, 1, 1], [], []>} : vector<8x128xf32>, vector<128x128xf32>, vector<8x128xf32> -> vector<8x128xf32>
    %108 = arith.addf %106, %107 : vector<8x128xf32>
    %109 = math.tanh %108 : vector<8x128xf32>
    %c3_i32 = arith.constant 3 : i32
    %110 = arith.index_cast %c3_i32 : i32 to index
    %c0_45 = arith.constant 0 : index
    %111 = memref.load %arg0[%110, %c0_45] : memref<8x8xi32, #tpu.memory_space<smem>>
    %112 = arith.index_cast %111 : i32 to index
    %c0_46 = arith.constant 0 : index
    %113 = vector.load %arg1[%112, %c0_46] : memref<24x128xf32, #tpu.memory_space<vmem>>, vector<1x128xf32>
    %114 = arith.index_cast %c3_i32 : i32 to index
    %c1_47 = arith.constant 1 : index
    %115 = memref.load %arg0[%114, %c1_47] : memref<8x8xi32, #tpu.memory_space<smem>>
    %116 = arith.index_cast %115 : i32 to index
    %c0_48 = arith.constant 0 : index
    %117 = vector.load %arg1[%116, %c0_48] : memref<24x128xf32, #tpu.memory_space<vmem>>, vector<1x128xf32>
    %118 = arith.index_cast %c3_i32 : i32 to index
    %c2_49 = arith.constant 2 : index
    %119 = memref.load %arg0[%118, %c2_49] : memref<8x8xi32, #tpu.memory_space<smem>>
    %120 = arith.index_cast %119 : i32 to index
    %c0_50 = arith.constant 0 : index
    %121 = vector.load %arg1[%120, %c0_50] : memref<24x128xf32, #tpu.memory_space<vmem>>, vector<1x128xf32>
    %122 = arith.index_cast %c3_i32 : i32 to index
    %c3_51 = arith.constant 3 : index
    %123 = memref.load %arg0[%122, %c3_51] : memref<8x8xi32, #tpu.memory_space<smem>>
    %124 = arith.index_cast %123 : i32 to index
    %c0_52 = arith.constant 0 : index
    %125 = vector.load %arg1[%124, %c0_52] : memref<24x128xf32, #tpu.memory_space<vmem>>, vector<1x128xf32>
    %126 = arith.index_cast %c3_i32 : i32 to index
    %c4_53 = arith.constant 4 : index
    %127 = memref.load %arg0[%126, %c4_53] : memref<8x8xi32, #tpu.memory_space<smem>>
    %128 = arith.index_cast %127 : i32 to index
    %c0_54 = arith.constant 0 : index
    %129 = vector.load %arg1[%128, %c0_54] : memref<24x128xf32, #tpu.memory_space<vmem>>, vector<1x128xf32>
    %130 = arith.index_cast %c3_i32 : i32 to index
    %c5_55 = arith.constant 5 : index
    %131 = memref.load %arg0[%130, %c5_55] : memref<8x8xi32, #tpu.memory_space<smem>>
    %132 = arith.index_cast %131 : i32 to index
    %c0_56 = arith.constant 0 : index
    %133 = vector.load %arg1[%132, %c0_56] : memref<24x128xf32, #tpu.memory_space<vmem>>, vector<1x128xf32>
    %134 = arith.index_cast %c3_i32 : i32 to index
    %c6_57 = arith.constant 6 : index
    %135 = memref.load %arg0[%134, %c6_57] : memref<8x8xi32, #tpu.memory_space<smem>>
    %136 = arith.index_cast %135 : i32 to index
    %c0_58 = arith.constant 0 : index
    %137 = vector.load %arg1[%136, %c0_58] : memref<24x128xf32, #tpu.memory_space<vmem>>, vector<1x128xf32>
    %138 = arith.index_cast %c3_i32 : i32 to index
    %c7_59 = arith.constant 7 : index
    %139 = memref.load %arg0[%138, %c7_59] : memref<8x8xi32, #tpu.memory_space<smem>>
    %140 = arith.index_cast %139 : i32 to index
    %c0_60 = arith.constant 0 : index
    %141 = vector.load %arg1[%140, %c0_60] : memref<24x128xf32, #tpu.memory_space<vmem>>, vector<1x128xf32>
    %142 = tpu.concatenate %113, %117, %121, %125, %129, %133, %137, %141 in 0 : vector<1x128xf32>, vector<1x128xf32>, vector<1x128xf32>, vector<1x128xf32>, vector<1x128xf32>, vector<1x128xf32>, vector<1x128xf32>, vector<1x128xf32> -> vector<8x128xf32>
    %cst_61 = arith.constant dense<0.000000e+00> : vector<8x128xf32>
    %143 = tpu.matmul %109, %0, %cst_61 {dimension_numbers = #tpu.dot_dimension_numbers<[1], [0], [0], [1], [0, 0, 1, 1], [], []>} : vector<8x128xf32>, vector<128x128xf32>, vector<8x128xf32> -> vector<8x128xf32>
    %144 = arith.addf %142, %143 : vector<8x128xf32>
    %145 = math.tanh %144 : vector<8x128xf32>
    %c4_i32 = arith.constant 4 : i32
    %146 = arith.index_cast %c4_i32 : i32 to index
    %c0_62 = arith.constant 0 : index
    %147 = memref.load %arg0[%146, %c0_62] : memref<8x8xi32, #tpu.memory_space<smem>>
    %148 = arith.index_cast %147 : i32 to index
    %c0_63 = arith.constant 0 : index
    %149 = vector.load %arg1[%148, %c0_63] : memref<24x128xf32, #tpu.memory_space<vmem>>, vector<1x128xf32>
    %150 = arith.index_cast %c4_i32 : i32 to index
    %c1_64 = arith.constant 1 : index
    %151 = memref.load %arg0[%150, %c1_64] : memref<8x8xi32, #tpu.memory_space<smem>>
    %152 = arith.index_cast %151 : i32 to index
    %c0_65 = arith.constant 0 : index
    %153 = vector.load %arg1[%152, %c0_65] : memref<24x128xf32, #tpu.memory_space<vmem>>, vector<1x128xf32>
    %154 = arith.index_cast %c4_i32 : i32 to index
    %c2_66 = arith.constant 2 : index
    %155 = memref.load %arg0[%154, %c2_66] : memref<8x8xi32, #tpu.memory_space<smem>>
    %156 = arith.index_cast %155 : i32 to index
    %c0_67 = arith.constant 0 : index
    %157 = vector.load %arg1[%156, %c0_67] : memref<24x128xf32, #tpu.memory_space<vmem>>, vector<1x128xf32>
    %158 = arith.index_cast %c4_i32 : i32 to index
    %c3_68 = arith.constant 3 : index
    %159 = memref.load %arg0[%158, %c3_68] : memref<8x8xi32, #tpu.memory_space<smem>>
    %160 = arith.index_cast %159 : i32 to index
    %c0_69 = arith.constant 0 : index
    %161 = vector.load %arg1[%160, %c0_69] : memref<24x128xf32, #tpu.memory_space<vmem>>, vector<1x128xf32>
    %162 = arith.index_cast %c4_i32 : i32 to index
    %c4_70 = arith.constant 4 : index
    %163 = memref.load %arg0[%162, %c4_70] : memref<8x8xi32, #tpu.memory_space<smem>>
    %164 = arith.index_cast %163 : i32 to index
    %c0_71 = arith.constant 0 : index
    %165 = vector.load %arg1[%164, %c0_71] : memref<24x128xf32, #tpu.memory_space<vmem>>, vector<1x128xf32>
    %166 = arith.index_cast %c4_i32 : i32 to index
    %c5_72 = arith.constant 5 : index
    %167 = memref.load %arg0[%166, %c5_72] : memref<8x8xi32, #tpu.memory_space<smem>>
    %168 = arith.index_cast %167 : i32 to index
    %c0_73 = arith.constant 0 : index
    %169 = vector.load %arg1[%168, %c0_73] : memref<24x128xf32, #tpu.memory_space<vmem>>, vector<1x128xf32>
    %170 = arith.index_cast %c4_i32 : i32 to index
    %c6_74 = arith.constant 6 : index
    %171 = memref.load %arg0[%170, %c6_74] : memref<8x8xi32, #tpu.memory_space<smem>>
    %172 = arith.index_cast %171 : i32 to index
    %c0_75 = arith.constant 0 : index
    %173 = vector.load %arg1[%172, %c0_75] : memref<24x128xf32, #tpu.memory_space<vmem>>, vector<1x128xf32>
    %174 = arith.index_cast %c4_i32 : i32 to index
    %c7_76 = arith.constant 7 : index
    %175 = memref.load %arg0[%174, %c7_76] : memref<8x8xi32, #tpu.memory_space<smem>>
    %176 = arith.index_cast %175 : i32 to index
    %c0_77 = arith.constant 0 : index
    %177 = vector.load %arg1[%176, %c0_77] : memref<24x128xf32, #tpu.memory_space<vmem>>, vector<1x128xf32>
    %178 = tpu.concatenate %149, %153, %157, %161, %165, %169, %173, %177 in 0 : vector<1x128xf32>, vector<1x128xf32>, vector<1x128xf32>, vector<1x128xf32>, vector<1x128xf32>, vector<1x128xf32>, vector<1x128xf32>, vector<1x128xf32> -> vector<8x128xf32>
    %cst_78 = arith.constant dense<0.000000e+00> : vector<8x128xf32>
    %179 = tpu.matmul %145, %0, %cst_78 {dimension_numbers = #tpu.dot_dimension_numbers<[1], [0], [0], [1], [0, 0, 1, 1], [], []>} : vector<8x128xf32>, vector<128x128xf32>, vector<8x128xf32> -> vector<8x128xf32>
    %180 = arith.addf %178, %179 : vector<8x128xf32>
    %181 = math.tanh %180 : vector<8x128xf32>
    %c5_i32 = arith.constant 5 : i32
    %182 = arith.index_cast %c5_i32 : i32 to index
    %c0_79 = arith.constant 0 : index
    %183 = memref.load %arg0[%182, %c0_79] : memref<8x8xi32, #tpu.memory_space<smem>>
    %184 = arith.index_cast %183 : i32 to index
    %c0_80 = arith.constant 0 : index
    %185 = vector.load %arg1[%184, %c0_80] : memref<24x128xf32, #tpu.memory_space<vmem>>, vector<1x128xf32>
    %186 = arith.index_cast %c5_i32 : i32 to index
    %c1_81 = arith.constant 1 : index
    %187 = memref.load %arg0[%186, %c1_81] : memref<8x8xi32, #tpu.memory_space<smem>>
    %188 = arith.index_cast %187 : i32 to index
    %c0_82 = arith.constant 0 : index
    %189 = vector.load %arg1[%188, %c0_82] : memref<24x128xf32, #tpu.memory_space<vmem>>, vector<1x128xf32>
    %190 = arith.index_cast %c5_i32 : i32 to index
    %c2_83 = arith.constant 2 : index
    %191 = memref.load %arg0[%190, %c2_83] : memref<8x8xi32, #tpu.memory_space<smem>>
    %192 = arith.index_cast %191 : i32 to index
    %c0_84 = arith.constant 0 : index
    %193 = vector.load %arg1[%192, %c0_84] : memref<24x128xf32, #tpu.memory_space<vmem>>, vector<1x128xf32>
    %194 = arith.index_cast %c5_i32 : i32 to index
    %c3_85 = arith.constant 3 : index
    %195 = memref.load %arg0[%194, %c3_85] : memref<8x8xi32, #tpu.memory_space<smem>>
    %196 = arith.index_cast %195 : i32 to index
    %c0_86 = arith.constant 0 : index
    %197 = vector.load %arg1[%196, %c0_86] : memref<24x128xf32, #tpu.memory_space<vmem>>, vector<1x128xf32>
    %198 = arith.index_cast %c5_i32 : i32 to index
    %c4_87 = arith.constant 4 : index
    %199 = memref.load %arg0[%198, %c4_87] : memref<8x8xi32, #tpu.memory_space<smem>>
    %200 = arith.index_cast %199 : i32 to index
    %c0_88 = arith.constant 0 : index
    %201 = vector.load %arg1[%200, %c0_88] : memref<24x128xf32, #tpu.memory_space<vmem>>, vector<1x128xf32>
    %202 = arith.index_cast %c5_i32 : i32 to index
    %c5_89 = arith.constant 5 : index
    %203 = memref.load %arg0[%202, %c5_89] : memref<8x8xi32, #tpu.memory_space<smem>>
    %204 = arith.index_cast %203 : i32 to index
    %c0_90 = arith.constant 0 : index
    %205 = vector.load %arg1[%204, %c0_90] : memref<24x128xf32, #tpu.memory_space<vmem>>, vector<1x128xf32>
    %206 = arith.index_cast %c5_i32 : i32 to index
    %c6_91 = arith.constant 6 : index
    %207 = memref.load %arg0[%206, %c6_91] : memref<8x8xi32, #tpu.memory_space<smem>>
    %208 = arith.index_cast %207 : i32 to index
    %c0_92 = arith.constant 0 : index
    %209 = vector.load %arg1[%208, %c0_92] : memref<24x128xf32, #tpu.memory_space<vmem>>, vector<1x128xf32>
    %210 = arith.index_cast %c5_i32 : i32 to index
    %c7_93 = arith.constant 7 : index
    %211 = memref.load %arg0[%210, %c7_93] : memref<8x8xi32, #tpu.memory_space<smem>>
    %212 = arith.index_cast %211 : i32 to index
    %c0_94 = arith.constant 0 : index
    %213 = vector.load %arg1[%212, %c0_94] : memref<24x128xf32, #tpu.memory_space<vmem>>, vector<1x128xf32>
    %214 = tpu.concatenate %185, %189, %193, %197, %201, %205, %209, %213 in 0 : vector<1x128xf32>, vector<1x128xf32>, vector<1x128xf32>, vector<1x128xf32>, vector<1x128xf32>, vector<1x128xf32>, vector<1x128xf32>, vector<1x128xf32> -> vector<8x128xf32>
    %cst_95 = arith.constant dense<0.000000e+00> : vector<8x128xf32>
    %215 = tpu.matmul %181, %0, %cst_95 {dimension_numbers = #tpu.dot_dimension_numbers<[1], [0], [0], [1], [0, 0, 1, 1], [], []>} : vector<8x128xf32>, vector<128x128xf32>, vector<8x128xf32> -> vector<8x128xf32>
    %216 = arith.addf %214, %215 : vector<8x128xf32>
    %217 = math.tanh %216 : vector<8x128xf32>
    %c6_i32 = arith.constant 6 : i32
    %218 = arith.index_cast %c6_i32 : i32 to index
    %c0_96 = arith.constant 0 : index
    %219 = memref.load %arg0[%218, %c0_96] : memref<8x8xi32, #tpu.memory_space<smem>>
    %220 = arith.index_cast %219 : i32 to index
    %c0_97 = arith.constant 0 : index
    %221 = vector.load %arg1[%220, %c0_97] : memref<24x128xf32, #tpu.memory_space<vmem>>, vector<1x128xf32>
    %222 = arith.index_cast %c6_i32 : i32 to index
    %c1_98 = arith.constant 1 : index
    %223 = memref.load %arg0[%222, %c1_98] : memref<8x8xi32, #tpu.memory_space<smem>>
    %224 = arith.index_cast %223 : i32 to index
    %c0_99 = arith.constant 0 : index
    %225 = vector.load %arg1[%224, %c0_99] : memref<24x128xf32, #tpu.memory_space<vmem>>, vector<1x128xf32>
    %226 = arith.index_cast %c6_i32 : i32 to index
    %c2_100 = arith.constant 2 : index
    %227 = memref.load %arg0[%226, %c2_100] : memref<8x8xi32, #tpu.memory_space<smem>>
    %228 = arith.index_cast %227 : i32 to index
    %c0_101 = arith.constant 0 : index
    %229 = vector.load %arg1[%228, %c0_101] : memref<24x128xf32, #tpu.memory_space<vmem>>, vector<1x128xf32>
    %230 = arith.index_cast %c6_i32 : i32 to index
    %c3_102 = arith.constant 3 : index
    %231 = memref.load %arg0[%230, %c3_102] : memref<8x8xi32, #tpu.memory_space<smem>>
    %232 = arith.index_cast %231 : i32 to index
    %c0_103 = arith.constant 0 : index
    %233 = vector.load %arg1[%232, %c0_103] : memref<24x128xf32, #tpu.memory_space<vmem>>, vector<1x128xf32>
    %234 = arith.index_cast %c6_i32 : i32 to index
    %c4_104 = arith.constant 4 : index
    %235 = memref.load %arg0[%234, %c4_104] : memref<8x8xi32, #tpu.memory_space<smem>>
    %236 = arith.index_cast %235 : i32 to index
    %c0_105 = arith.constant 0 : index
    %237 = vector.load %arg1[%236, %c0_105] : memref<24x128xf32, #tpu.memory_space<vmem>>, vector<1x128xf32>
    %238 = arith.index_cast %c6_i32 : i32 to index
    %c5_106 = arith.constant 5 : index
    %239 = memref.load %arg0[%238, %c5_106] : memref<8x8xi32, #tpu.memory_space<smem>>
    %240 = arith.index_cast %239 : i32 to index
    %c0_107 = arith.constant 0 : index
    %241 = vector.load %arg1[%240, %c0_107] : memref<24x128xf32, #tpu.memory_space<vmem>>, vector<1x128xf32>
    %242 = arith.index_cast %c6_i32 : i32 to index
    %c6_108 = arith.constant 6 : index
    %243 = memref.load %arg0[%242, %c6_108] : memref<8x8xi32, #tpu.memory_space<smem>>
    %244 = arith.index_cast %243 : i32 to index
    %c0_109 = arith.constant 0 : index
    %245 = vector.load %arg1[%244, %c0_109] : memref<24x128xf32, #tpu.memory_space<vmem>>, vector<1x128xf32>
    %246 = arith.index_cast %c6_i32 : i32 to index
    %c7_110 = arith.constant 7 : index
    %247 = memref.load %arg0[%246, %c7_110] : memref<8x8xi32, #tpu.memory_space<smem>>
    %248 = arith.index_cast %247 : i32 to index
    %c0_111 = arith.constant 0 : index
    %249 = vector.load %arg1[%248, %c0_111] : memref<24x128xf32, #tpu.memory_space<vmem>>, vector<1x128xf32>
    %250 = tpu.concatenate %221, %225, %229, %233, %237, %241, %245, %249 in 0 : vector<1x128xf32>, vector<1x128xf32>, vector<1x128xf32>, vector<1x128xf32>, vector<1x128xf32>, vector<1x128xf32>, vector<1x128xf32>, vector<1x128xf32> -> vector<8x128xf32>
    %cst_112 = arith.constant dense<0.000000e+00> : vector<8x128xf32>
    %251 = tpu.matmul %217, %0, %cst_112 {dimension_numbers = #tpu.dot_dimension_numbers<[1], [0], [0], [1], [0, 0, 1, 1], [], []>} : vector<8x128xf32>, vector<128x128xf32>, vector<8x128xf32> -> vector<8x128xf32>
    %252 = arith.addf %250, %251 : vector<8x128xf32>
    %253 = math.tanh %252 : vector<8x128xf32>
    %c7_i32 = arith.constant 7 : i32
    %254 = arith.index_cast %c7_i32 : i32 to index
    %c0_113 = arith.constant 0 : index
    %255 = memref.load %arg0[%254, %c0_113] : memref<8x8xi32, #tpu.memory_space<smem>>
    %256 = arith.index_cast %255 : i32 to index
    %c0_114 = arith.constant 0 : index
    %257 = vector.load %arg1[%256, %c0_114] : memref<24x128xf32, #tpu.memory_space<vmem>>, vector<1x128xf32>
    %258 = arith.index_cast %c7_i32 : i32 to index
    %c1_115 = arith.constant 1 : index
    %259 = memref.load %arg0[%258, %c1_115] : memref<8x8xi32, #tpu.memory_space<smem>>
    %260 = arith.index_cast %259 : i32 to index
    %c0_116 = arith.constant 0 : index
    %261 = vector.load %arg1[%260, %c0_116] : memref<24x128xf32, #tpu.memory_space<vmem>>, vector<1x128xf32>
    %262 = arith.index_cast %c7_i32 : i32 to index
    %c2_117 = arith.constant 2 : index
    %263 = memref.load %arg0[%262, %c2_117] : memref<8x8xi32, #tpu.memory_space<smem>>
    %264 = arith.index_cast %263 : i32 to index
    %c0_118 = arith.constant 0 : index
    %265 = vector.load %arg1[%264, %c0_118] : memref<24x128xf32, #tpu.memory_space<vmem>>, vector<1x128xf32>
    %266 = arith.index_cast %c7_i32 : i32 to index
    %c3_119 = arith.constant 3 : index
    %267 = memref.load %arg0[%266, %c3_119] : memref<8x8xi32, #tpu.memory_space<smem>>
    %268 = arith.index_cast %267 : i32 to index
    %c0_120 = arith.constant 0 : index
    %269 = vector.load %arg1[%268, %c0_120] : memref<24x128xf32, #tpu.memory_space<vmem>>, vector<1x128xf32>
    %270 = arith.index_cast %c7_i32 : i32 to index
    %c4_121 = arith.constant 4 : index
    %271 = memref.load %arg0[%270, %c4_121] : memref<8x8xi32, #tpu.memory_space<smem>>
    %272 = arith.index_cast %271 : i32 to index
    %c0_122 = arith.constant 0 : index
    %273 = vector.load %arg1[%272, %c0_122] : memref<24x128xf32, #tpu.memory_space<vmem>>, vector<1x128xf32>
    %274 = arith.index_cast %c7_i32 : i32 to index
    %c5_123 = arith.constant 5 : index
    %275 = memref.load %arg0[%274, %c5_123] : memref<8x8xi32, #tpu.memory_space<smem>>
    %276 = arith.index_cast %275 : i32 to index
    %c0_124 = arith.constant 0 : index
    %277 = vector.load %arg1[%276, %c0_124] : memref<24x128xf32, #tpu.memory_space<vmem>>, vector<1x128xf32>
    %278 = arith.index_cast %c7_i32 : i32 to index
    %c6_125 = arith.constant 6 : index
    %279 = memref.load %arg0[%278, %c6_125] : memref<8x8xi32, #tpu.memory_space<smem>>
    %280 = arith.index_cast %279 : i32 to index
    %c0_126 = arith.constant 0 : index
    %281 = vector.load %arg1[%280, %c0_126] : memref<24x128xf32, #tpu.memory_space<vmem>>, vector<1x128xf32>
    %282 = arith.index_cast %c7_i32 : i32 to index
    %c7_127 = arith.constant 7 : index
    %283 = memref.load %arg0[%282, %c7_127] : memref<8x8xi32, #tpu.memory_space<smem>>
    %284 = arith.index_cast %283 : i32 to index
    %c0_128 = arith.constant 0 : index
    %285 = vector.load %arg1[%284, %c0_128] : memref<24x128xf32, #tpu.memory_space<vmem>>, vector<1x128xf32>
    %286 = tpu.concatenate %257, %261, %265, %269, %273, %277, %281, %285 in 0 : vector<1x128xf32>, vector<1x128xf32>, vector<1x128xf32>, vector<1x128xf32>, vector<1x128xf32>, vector<1x128xf32>, vector<1x128xf32>, vector<1x128xf32> -> vector<8x128xf32>
    %cst_129 = arith.constant dense<0.000000e+00> : vector<8x128xf32>
    %287 = tpu.matmul %253, %0, %cst_129 {dimension_numbers = #tpu.dot_dimension_numbers<[1], [0], [0], [1], [0, 0, 1, 1], [], []>} : vector<8x128xf32>, vector<128x128xf32>, vector<8x128xf32> -> vector<8x128xf32>
    %288 = arith.addf %286, %287 : vector<8x128xf32>
    %289 = math.tanh %288 : vector<8x128xf32>
    %c8_i32 = arith.constant 8 : i32
    %c0_130 = arith.constant 0 : index
    %c0_131 = arith.constant 0 : index
    %290 = vector.load %arg3[%c0_130, %c0_131] : memref<128x128xf32, #tpu.memory_space<vmem>>, vector<128x128xf32>
    %cst_132 = arith.constant dense<0.000000e+00> : vector<8x128xf32>
    %291 = tpu.matmul %289, %290, %cst_132 {dimension_numbers = #tpu.dot_dimension_numbers<[1], [0], [0], [1], [0, 0, 1, 1], [], []>} : vector<8x128xf32>, vector<128x128xf32>, vector<8x128xf32> -> vector<8x128xf32>
    %c0_133 = arith.constant 0 : index
    %c0_134 = arith.constant 0 : index
    %292 = vector.load %arg4[%c0_133, %c0_134] : memref<1x128xf32, #tpu.memory_space<vmem>>, vector<1x128xf32>
    %293 = vector.broadcast %292 : vector<1x128xf32> to vector<8x128xf32>
    %294 = arith.addf %291, %293 : vector<8x128xf32>
    %c0_135 = arith.constant 0 : index
    %c0_136 = arith.constant 0 : index
    %295 = vector.load %arg5[%c0_135, %c0_136] : memref<8x128xf32, #tpu.memory_space<vmem>>, vector<8x128xf32>
    tpu.vector_store %arg5[%c0_135, %c0_136], %294 {strides = array<i32>} : memref<8x128xf32, #tpu.memory_space<vmem>>, vector<8x128xf32>,
    return
  }
}

</mosaic_0001>

<llo_original>
// kernel: tpu_custom_call.1
$region0: #{tpu_custom_call.1}
  #allocation0 [shape = 'u32[]', space=smem, size = 0x4, offset = 0x4, fixed_abs, tag = 'smem constant byte address 0x4 - core index']
  #allocation1 [shape = 'u32[144,128]{1,0:T(1,128)}', space=vmem, size = 0x12000, scoped, tag = 'internal scratch']
  %s0 = inlined_call_operand.hbm [shape: s32[8,8], index: 0, kind: input, shape index: {}]
  %s1 = inlined_call_operand.hbm [shape: f32[24,128], index: 1, kind: input, shape index: {}]
  %s2 = inlined_call_operand.hbm [shape: f32[128,128], index: 2, kind: input, shape index: {}]
  %s3 = inlined_call_operand.hbm [shape: f32[128,128], index: 3, kind: input, shape index: {}]
  %s4 = inlined_call_operand.vmem [shape: f32[1,128], index: 4, kind: input, shape index: {}]
  %s5 = inlined_call_operand.hbm [shape: f32[8,128], index: 5, kind: output, shape index: {}]
  %s6 = sld [smem:[#allocation0]]
  $region46: #{tpu_custom_call.1} parent=0
    _
  %s8 = ssub.s32 1, %s6
  %s9 = scalar_select 0, %s8, %s6
  $region1: #{tpu_custom_call.1} parent=0
    #allocation2 [shape = 'u8[4096]{0}', space=smem, size = 0x1000, scoped, tag = 'input window, operand 0, single buffered']
    #allocation3 [shape = 's32[1]{0}', space=sflag, size = 0x4, scoped, tag = 'scoped memory for tpu_custom_call.1']
    #allocation4 [shape = 's32[1]{0}', space=sflag, size = 0x4, scoped, tag = 'scoped memory for tpu_custom_call.1']
    #allocation5 [shape = 's32[1]{0}', space=sflag, size = 0x4, scoped, tag = 'scoped memory for tpu_custom_call.1']
    #allocation6 [shape = 'u8[12288]{0}', space=vmem, size = 0x3000, scoped, tag = 'input window, operand 1, single buffered']
    #allocation7 [shape = 'u8[65536]{0}', space=vmem, size = 0x10000, scoped, tag = 'input window, operand 2, single buffered']
    #allocation8 [shape = 's32[1]{0}', space=sflag, size = 0x4, scoped, tag = 'scoped memory for tpu_custom_call.1']
    #allocation9 [shape = 'u8[65536]{0}', space=vmem, size = 0x10000, scoped, tag = 'input window, operand 3, single buffered']
    #allocation10 [shape = 'u8[4096]{0}', space=vmem, size = 0x1000, scoped, tag = 'output window, operand 0, single buffered']
    %10 = vsyncpa [#allocation5], 0
    %11 = vsyncpa [#allocation3], 0
    %12 = vsyncpa [#allocation8], 0
    %13 = vsyncpa [#allocation4], 0
    // Predicated region
    $region2: #{tpu_custom_call.1} parent=1 // pred_check
      _
    $region3: #{tpu_custom_call.1} parent=1 // pred_check_branch
      %15 = sbr.rel (0) target = $region5
    $region4: #{tpu_custom_call.1} parent=1 // pred_region
      %s17 = ssub.s32 128, 128
      %18 = vsyncadd [#allocation5], %s17
      %21 = dma.hbm_to_smem %s0, 128, [#allocation2], [#allocation5]
    $region5: #{tpu_custom_call.1} parent=1 // pred_fallthru
      _
    // Predicated region
    $region6: #{tpu_custom_call.1} parent=1 // pred_check
      _
    $region7: #{tpu_custom_call.1} parent=1 // pred_check_branch
      %23 = sbr.rel (0) target = $region9
    $region8: #{tpu_custom_call.1} parent=1 // pred_region
      %s25 = ssub.s32 384, 384
      %26 = vsyncadd [#allocation3], %s25
      %s27 = sshll.u32 [#allocation6], 4
      %s28 = int_to_ptr.vmem [resolvable:$true] %s27
      %33 = dma.hbm_to_vmem [thread:$0]  %s1, 384, %s28, [#allocation3], 128, 128, 8
    $region9: #{tpu_custom_call.1} parent=1 // pred_fallthru
      _
    // Predicated region
    $region10: #{tpu_custom_call.1} parent=1 // pred_check
      _
    $region11: #{tpu_custom_call.1} parent=1 // pred_check_branch
      %35 = sbr.rel (0) target = $region13
    $region12: #{tpu_custom_call.1} parent=1 // pred_region
      %s37 = ssub.s32 2048, 2048
      %38 = vsyncadd [#allocation8], %s37
      %s39 = sshll.u32 [#allocation7], 4
      %s40 = int_to_ptr.vmem [resolvable:$true] %s39
      %45 = dma.hbm_to_vmem [thread:$0]  %s2, 2048, %s40, [#allocation8], 128, 128, 8
    $region13: #{tpu_custom_call.1} parent=1 // pred_fallthru
      _
    // Predicated region
    $region14: #{tpu_custom_call.1} parent=1 // pred_check
      _
    $region15: #{tpu_custom_call.1} parent=1 // pred_check_branch
      %47 = sbr.rel (0) target = $region17
    $region16: #{tpu_custom_call.1} parent=1 // pred_region
      %s49 = ssub.s32 2048, 2048
      %50 = vsyncadd [#allocation8], %s49
      %s51 = sshll.u32 [#allocation9], 4
      %s52 = int_to_ptr.vmem [resolvable:$true] %s51
      %57 = dma.hbm_to_vmem [thread:$0]  %s3, 2048, %s52, [#allocation8], 128, 128, 8
    $region17: #{tpu_custom_call.1} parent=1 // pred_fallthru
      _
    // Predicated region
    $region18: #{tpu_custom_call.1} parent=1 // pred_check
      _
    $region19: #{tpu_custom_call.1} parent=1 // pred_check_branch
      %59 = sbr.rel (0) target = $region21
    $region20: #{tpu_custom_call.1} parent=1 // pred_region
      _
    $region21: #{tpu_custom_call.1} parent=1 // pred_fallthru
      _
    // Predicated region
    $region22: #{tpu_custom_call.1} parent=1 // pred_check
      _
    $region23: #{tpu_custom_call.1} parent=1 // pred_check_branch
      %61 = sbr.rel (0) target = $region25
    $region24: #{tpu_custom_call.1} parent=1 // pred_region
      %62 = dma.done [#allocation5], 128
    $region25: #{tpu_custom_call.1} parent=1 // pred_fallthru
      _
    // Predicated region
    $region26: #{tpu_custom_call.1} parent=1 // pred_check
      _
    $region27: #{tpu_custom_call.1} parent=1 // pred_check_branch
      %64 = sbr.rel (0) target = $region29
    $region28: #{tpu_custom_call.1} parent=1 // pred_region
      %65 = dma.done [#allocation3], 384
    $region29: #{tpu_custom_call.1} parent=1 // pred_fallthru
      _
    // Predicated region
    $region30: #{tpu_custom_call.1} parent=1 // pred_check
      _
    $region31: #{tpu_custom_call.1} parent=1 // pred_check_branch
      %67 = sbr.rel (0) target = $region33
    $region32: #{tpu_custom_call.1} parent=1 // pred_region
      %68 = dma.done [#allocation8], 2048
    $region33: #{tpu_custom_call.1} parent=1 // pred_fallthru
      _
    // Predicated region
    $region34: #{tpu_custom_call.1} parent=1 // pred_check
      _
    $region35: #{tpu_custom_call.1} parent=1 // pred_check_branch
      %70 = sbr.rel (0) target = $region37
    $region36: #{tpu_custom_call.1} parent=1 // pred_region
      %71 = dma.done [#allocation8], 2048
    $region37: #{tpu_custom_call.1} parent=1 // pred_fallthru
      _
    %72 = sfence
    %v73 = vld [vmem:[#allocation7] sm:$0xff]
    %v74 = vld [vmem:[#allocation7 + $0x8] sm:$0xff]
    %v75 = vld [vmem:[#allocation7 + $0x10] sm:$0xff]
    %v76 = vld [vmem:[#allocation7 + $0x18] sm:$0xff]
    %v77 = vld [vmem:[#allocation7 + $0x20] sm:$0xff]
    %v78 = vld [vmem:[#allocation7 + $0x28] sm:$0xff]
    %v79 = vld [vmem:[#allocation7 + $0x30] sm:$0xff]
    %v80 = vld [vmem:[#allocation7 + $0x38] sm:$0xff]
    %v81 = vld [vmem:[#allocation7 + $0x40] sm:$0xff]
    %v82 = vld [vmem:[#allocation7 + $0x48] sm:$0xff]
    %v83 = vld [vmem:[#allocation7 + $0x50] sm:$0xff]
    %v84 = vld [vmem:[#allocation7 + $0x58] sm:$0xff]
    %v85 = vld [vmem:[#allocation7 + $0x60] sm:$0xff]
    %v86 = vld [vmem:[#allocation7 + $0x68] sm:$0xff]
    %v87 = vld [vmem:[#allocation7 + $0x70] sm:$0xff]
    %v88 = vld [vmem:[#allocation7 + $0x78] sm:$0xff]
    %s89 = sld [smem:[#allocation2]]
    %s90 = scalar_lea.vmem [#allocation6], %s89
    %v91 = vld [vmem:[%s90] sm:$0x1]
    %s92 = sld [smem:[#allocation2 + $0x1]]
    %s93 = scalar_lea.vmem [#allocation6], %s92
    %v94 = vld [vmem:[%s93] sm:$0x1]
    %s95 = sld [smem:[#allocation2 + $0x2]]
    %s96 = scalar_lea.vmem [#allocation6], %s95
    %v97 = vld [vmem:[%s96] sm:$0x1]
    %s98 = sld [smem:[#allocation2 + $0x3]]
    %s99 = scalar_lea.vmem [#allocation6], %s98
    %v100 = vld [vmem:[%s99] sm:$0x1]
    %s101 = sld [smem:[#allocation2 + $0x4]]
    %s102 = scalar_lea.vmem [#allocation6], %s101
    %v103 = vld [vmem:[%s102] sm:$0x1]
    %s104 = sld [smem:[#allocation2 + $0x5]]
    %s105 = scalar_lea.vmem [#allocation6], %s104
    %v106 = vld [vmem:[%s105] sm:$0x1]
    %s107 = sld [smem:[#allocation2 + $0x6]]
    %s108 = scalar_lea.vmem [#allocation6], %s107
    %v109 = vld [vmem:[%s108] sm:$0x1]
    %s110 = sld [smem:[#allocation2 + $0x7]]
    %s111 = scalar_lea.vmem [#allocation6], %s110
    %v112 = vld [vmem:[%s111] sm:$0x1]
    %v114 = vrot.slane %v94, 7
    %v117 = vrot.slane %v97, 6
    %v120 = vrot.slane %v100, 5
    %v123 = vrot.slane %v103, 4
    %v126 = vrot.slane %v106, 3
    %v129 = vrot.slane %v109, 2
    %v132 = vrot.slane %v112, 1
    %vm134 = vcmask 1040384
    %v135 = vsel %vm134, %v91, %v114
    %vm136 = vcmask 1041408
    %v137 = vsel %vm136, %v135, %v117
    %vm138 = vcmask 1042432
    %v139 = vsel %vm138, %v137, %v120
    %vm140 = vcmask 1043456
    %v141 = vsel %vm140, %v139, %v123
    %vm142 = vcmask 1044480
    %v143 = vsel %vm142, %v141, %v126
    %vm144 = vcmask 1045504
    %v145 = vsel %vm144, %v143, %v129
    %vm146 = vcmask 1046528
    %v147 = vsel %vm146, %v145, %v132
    %148 = vmatprep.subr.mxu0 0.0
    %149 = vmatpush1.msra.mxu0 %v73
    %150 = vmatprep.subr.mxu0 0.0
    %151 = vmatpush1.msra.mxu0 %v74
    %152 = vmatprep.subr.mxu0 0.0
    %153 = vmatpush1.msra.mxu0 %v75
    %154 = vmatprep.subr.mxu0 0.0
    %155 = vmatpush1.msra.mxu0 %v76
    %156 = vmatprep.subr.mxu0 0.0
    %157 = vmatpush1.msra.mxu0 %v77
    %158 = vmatprep.subr.mxu0 0.0
    %159 = vmatpush1.msra.mxu0 %v78
    %160 = vmatprep.subr.mxu0 0.0
    %161 = vmatpush1.msra.mxu0 %v79
    %162 = vmatprep.subr.mxu0 0.0
    %163 = vmatpush1.msra.mxu0 %v80
    %164 = vmatprep.subr.mxu0 0.0
    %165 = vmatpush1.msra.mxu0 %v81
    %166 = vmatprep.subr.mxu0 0.0
    %167 = vmatpush1.msra.mxu0 %v82
    %168 = vmatprep.subr.mxu0 0.0
    %169 = vmatpush1.msra.mxu0 %v83
    %170 = vmatprep.subr.mxu0 0.0
    %171 = vmatpush1.msra.mxu0 %v84
    %172 = vmatprep.subr.mxu0 0.0
    %173 = vmatpush1.msra.mxu0 %v85
    %174 = vmatprep.subr.mxu0 0.0
    %175 = vmatpush1.msra.mxu0 %v86
    %176 = vmatprep.subr.mxu0 0.0
    %177 = vmatpush1.msra.mxu0 %v87
    %178 = vmatprep.subr.mxu0 0.0
    %179 = vmatpush1.msra.mxu0 %v88
    %180 = vmatprep.subr.mxu0 0.0
    %181 = vmatpush1.msra.mxu0 0.0
    %182 = vmatprep.subr.mxu0 0.0
    %183 = vmatpush1.msra.mxu0 0.0
    %184 = vmatprep.subr.mxu0 0.0
    %185 = vmatpush1.msra.mxu0 0.0
    %186 = vmatprep.subr.mxu0 0.0
    %187 = vmatpush1.msra.mxu0 0.0
    %188 = vmatprep.subr.mxu0 0.0
    %189 = vmatpush1.msra.mxu0 0.0
    %190 = vmatprep.subr.mxu0 0.0
    %191 = vmatpush1.msra.mxu0 0.0
    %192 = vmatprep.subr.mxu0 0.0
    %193 = vmatpush1.msra.mxu0 0.0
    %194 = vmatprep.subr.mxu0 0.0
    %195 = vmatpush1.msra.mxu0 0.0
    %196 = vmatprep.subr.mxu0 0.0
    %197 = vmatpush1.msra.mxu0 0.0
    %198 = vmatprep.subr.mxu0 0.0
    %199 = vmatpush1.msra.mxu0 0.0
    %200 = vmatprep.subr.mxu0 0.0
    %201 = vmatpush1.msra.mxu0 0.0
    %202 = vmatprep.subr.mxu0 0.0
    %203 = vmatpush1.msra.mxu0 0.0
    %204 = vmatprep.subr.mxu0 0.0
    %205 = vmatpush1.msra.mxu0 0.0
    %206 = vmatprep.subr.mxu0 0.0
    %207 = vmatpush1.msra.mxu0 0.0
    %208 = vmatprep.subr.mxu0 0.0
    %209 = vmatpush1.msra.mxu0 0.0
    %210 = vmatprep.subr.mxu0 0.0
    %211 = vmatpush1.msra.mxu0 0.0
    %212 = vmatprep.mubr.f32.mxu0 0.0
    %213 = vmatmul.mubr.f32.gmra.mrb[0].mxu0 0.0
    %v214 = vpop.f32.mrb[0].mxu0
    %v215 = vadd.f32 0.0, %v214
    %v216 = vpop.f32.mrb[0].mxu0
    %217 = vdwg.mxu0
    %v218 = vadd.f32 %v147, %v215
    %v219 = vtanh.pop %v218
    %s220 = sld [smem:[#allocation2 + $0x80]]
    %s221 = scalar_lea.vmem [#allocation6], %s220
    %v222 = vld [vmem:[%s221] sm:$0x1]
    %s223 = sld [smem:[#allocation2 + $0x81]]
    %s224 = scalar_lea.vmem [#allocation6], %s223
    %v225 = vld [vmem:[%s224] sm:$0x1]
    %s226 = sld [smem:[#allocation2 + $0x82]]
    %s227 = scalar_lea.vmem [#allocation6], %s226
    %v228 = vld [vmem:[%s227] sm:$0x1]
    %s229 = sld [smem:[#allocation2 + $0x83]]
    %s230 = scalar_lea.vmem [#allocation6], %s229
    %v231 = vld [vmem:[%s230] sm:$0x1]
    %s232 = sld [smem:[#allocation2 + $0x84]]
    %s233 = scalar_lea.vmem [#allocation6], %s232
    %v234 = vld [vmem:[%s233] sm:$0x1]
    %s235 = sld [smem:[#allocation2 + $0x85]]
    %s236 = scalar_lea.vmem [#allocation6], %s235
    %v237 = vld [vmem:[%s236] sm:$0x1]
    %s238 = sld [smem:[#allocation2 + $0x86]]
    %s239 = scalar_lea.vmem [#allocation6], %s238
    %v240 = vld [vmem:[%s239] sm:$0x1]
    %s241 = sld [smem:[#allocation2 + $0x87]]
    %s242 = scalar_lea.vmem [#allocation6], %s241
    %v243 = vld [vmem:[%s242] sm:$0x1]
    %v245 = vrot.slane %v225, 7
    %v248 = vrot.slane %v228, 6
    %v251 = vrot.slane %v231, 5
    %v254 = vrot.slane %v234, 4
    %v257 = vrot.slane %v237, 3
    %v260 = vrot.slane %v240, 2
    %v263 = vrot.slane %v243, 1
    %v265 = vsel %vm134, %v222, %v245
    %v266 = vsel %vm136, %v265, %v248
    %v267 = vsel %vm138, %v266, %v251
    %v268 = vsel %vm140, %v267, %v254
    %v269 = vsel %vm142, %v268, %v257
    %v270 = vsel %vm144, %v269, %v260
    %v271 = vsel %vm146, %v270, %v263
    %272 = vmatprep.subr.mxu0 0.0
    %273 = vmatpush1.msra.mxu0 %v73
    %274 = vmatprep.subr.mxu0 0.0
    %275 = vmatpush1.msra.mxu0 %v74
    %276 = vmatprep.subr.mxu0 0.0
    %277 = vmatpush1.msra.mxu0 %v75
    %278 = vmatprep.subr.mxu0 0.0
    %279 = vmatpush1.msra.mxu0 %v76
    %280 = vmatprep.subr.mxu0 0.0
    %281 = vmatpush1.msra.mxu0 %v77
    %282 = vmatprep.subr.mxu0 0.0
    %283 = vmatpush1.msra.mxu0 %v78
    %284 = vmatprep.subr.mxu0 0.0
    %285 = vmatpush1.msra.mxu0 %v79
    %286 = vmatprep.subr.mxu0 0.0
    %287 = vmatpush1.msra.mxu0 %v80
    %288 = vmatprep.subr.mxu0 0.0
    %289 = vmatpush1.msra.mxu0 %v81
    %290 = vmatprep.subr.mxu0 0.0
    %291 = vmatpush1.msra.mxu0 %v82
    %292 = vmatprep.subr.mxu0 0.0
    %293 = vmatpush1.msra.mxu0 %v83
    %294 = vmatprep.subr.mxu0 0.0
    %295 = vmatpush1.msra.mxu0 %v84
    %296 = vmatprep.subr.mxu0 0.0
    %297 = vmatpush1.msra.mxu0 %v85
    %298 = vmatprep.subr.mxu0 0.0
    %299 = vmatpush1.msra.mxu0 %v86
    %300 = vmatprep.subr.mxu0 0.0
    %301 = vmatpush1.msra.mxu0 %v87
    %302 = vmatprep.subr.mxu0 0.0
    %303 = vmatpush1.msra.mxu0 %v88
    %304 = vmatprep.subr.mxu0 0.0
    %305 = vmatpush1.msra.mxu0 0.0
    %306 = vmatprep.subr.mxu0 0.0
    %307 = vmatpush1.msra.mxu0 0.0
    %308 = vmatprep.subr.mxu0 0.0
    %309 = vmatpush1.msra.mxu0 0.0
    %310 = vmatprep.subr.mxu0 0.0
    %311 = vmatpush1.msra.mxu0 0.0
    %312 = vmatprep.subr.mxu0 0.0
    %313 = vmatpush1.msra.mxu0 0.0
    %314 = vmatprep.subr.mxu0 0.0
    %315 = vmatpush1.msra.mxu0 0.0
    %316 = vmatprep.subr.mxu0 0.0
    %317 = vmatpush1.msra.mxu0 0.0
    %318 = vmatprep.subr.mxu0 0.0
    %319 = vmatpush1.msra.mxu0 0.0
    %320 = vmatprep.subr.mxu0 0.0
    %321 = vmatpush1.msra.mxu0 0.0
    %322 = vmatprep.subr.mxu0 0.0
    %323 = vmatpush1.msra.mxu0 0.0
    %324 = vmatprep.subr.mxu0 0.0
    %325 = vmatpush1.msra.mxu0 0.0
    %326 = vmatprep.subr.mxu0 0.0
    %327 = vmatpush1.msra.mxu0 0.0
    %328 = vmatprep.subr.mxu0 0.0
    %329 = vmatpush1.msra.mxu0 0.0
    %330 = vmatprep.subr.mxu0 0.0
    %331 = vmatpush1.msra.mxu0 0.0
    %332 = vmatprep.subr.mxu0 0.0
    %333 = vmatpush1.msra.mxu0 0.0
    %334 = vmatprep.subr.mxu0 0.0
    %335 = vmatpush1.msra.mxu0 0.0
    %336 = vmatprep.mubr.f32.mxu0 0.0
    %337 = vmatmul.mubr.f32.gmra.mrb[0].mxu0 %v219
    %v338 = vpop.f32.mrb[0].mxu0
    %v339 = vadd.f32 0.0, %v338
    %v340 = vpop.f32.mrb[0].mxu0
    %341 = vdwg.mxu0
    %v342 = vadd.f32 %v271, %v339
    %v343 = vtanh.pop %v342
    %s344 = sld [smem:[#allocation2 + $0x100]]
    %s345 = scalar_lea.vmem [#allocation6], %s344
    %v346 = vld [vmem:[%s345] sm:$0x1]
    %s347 = sld [smem:[#allocation2 + $0x101]]
    %s348 = scalar_lea.vmem [#allocation6], %s347
    %v349 = vld [vmem:[%s348] sm:$0x1]
    %s350 = sld [smem:[#allocation2 + $0x102]]
    %s351 = scalar_lea.vmem [#allocation6], %s350
    %v352 = vld [vmem:[%s351] sm:$0x1]
    %s353 = sld [smem:[#allocation2 + $0x103]]
    %s354 = scalar_lea.vmem [#allocation6], %s353
    %v355 = vld [vmem:[%s354] sm:$0x1]
    %s356 = sld [smem:[#allocation2 + $0x104]]
    %s357 = scalar_lea.vmem [#allocation6], %s356
    %v358 = vld [vmem:[%s357] sm:$0x1]
    %s359 = sld [smem:[#allocation2 + $0x105]]
    %s360 = scalar_lea.vmem [#allocation6], %s359
    %v361 = vld [vmem:[%s360] sm:$0x1]
    %s362 = sld [smem:[#allocation2 + $0x106]]
    %s363 = scalar_lea.vmem [#allocation6], %s362
    %v364 = vld [vmem:[%s363] sm:$0x1]
    %s365 = sld [smem:[#allocation2 + $0x107]]
    %s366 = scalar_lea.vmem [#allocation6], %s365
    %v367 = vld [vmem:[%s366] sm:$0x1]
    %v369 = vrot.slane %v349, 7
    %v372 = vrot.slane %v352, 6
    %v375 = vrot.slane %v355, 5
    %v378 = vrot.slane %v358, 4
    %v381 = vrot.slane %v361, 3
    %v384 = vrot.slane %v364, 2
    %v387 = vrot.slane %v367, 1
    %v389 = vsel %vm134, %v346, %v369
    %v390 = vsel %vm136, %v389, %v372
    %v391 = vsel %vm138, %v390, %v375
    %v392 = vsel %vm140, %v391, %v378
    %v393 = vsel %vm142, %v392, %v381
    %v394 = vsel %vm144, %v393, %v384
    %v395 = vsel %vm146, %v394, %v387
    %396 = vmatprep.subr.mxu0 0.0
    %397 = vmatpush1.msra.mxu0 %v73
    %398 = vmatprep.subr.mxu0 0.0
    %399 = vmatpush1.msra.mxu0 %v74
    %400 = vmatprep.subr.mxu0 0.0
    %401 = vmatpush1.msra.mxu0 %v75
    %402 = vmatprep.subr.mxu0 0.0
    %403 = vmatpush1.msra.mxu0 %v76
    %404 = vmatprep.subr.mxu0 0.0
    %405 = vmatpush1.msra.mxu0 %v77
    %406 = vmatprep.subr.mxu0 0.0
    %407 = vmatpush1.msra.mxu0 %v78
    %408 = vmatprep.subr.mxu0 0.0
    %409 = vmatpush1.msra.mxu0 %v79
    %410 = vmatprep.subr.mxu0 0.0
    %411 = vmatpush1.msra.mxu0 %v80
    %412 = vmatprep.subr.mxu0 0.0
    %413 = vmatpush1.msra.mxu0 %v81
    %414 = vmatprep.subr.mxu0 0.0
    %415 = vmatpush1.msra.mxu0 %v82
    %416 = vmatprep.subr.mxu0 0.0
    %417 = vmatpush1.msra.mxu0 %v83
    %418 = vmatprep.subr.mxu0 0.0
    %419 = vmatpush1.msra.mxu0 %v84
    %420 = vmatprep.subr.mxu0 0.0
    %421 = vmatpush1.msra.mxu0 %v85
    %422 = vmatprep.subr.mxu0 0.0
    %423 = vmatpush1.msra.mxu0 %v86
    %424 = vmatprep.subr.mxu0 0.0
    %425 = vmatpush1.msra.mxu0 %v87
    %426 = vmatprep.subr.mxu0 0.0
    %427 = vmatpush1.msra.mxu0 %v88
    %428 = vmatprep.subr.mxu0 0.0
    %429 = vmatpush1.msra.mxu0 0.0
    %430 = vmatprep.subr.mxu0 0.0
    %431 = vmatpush1.msra.mxu0 0.0
    %432 = vmatprep.subr.mxu0 0.0
    %433 = vmatpush1.msra.mxu0 0.0
    %434 = vmatprep.subr.mxu0 0.0
    %435 = vmatpush1.msra.mxu0 0.0
    %436 = vmatprep.subr.mxu0 0.0
    %437 = vmatpush1.msra.mxu0 0.0
    %438 = vmatprep.subr.mxu0 0.0
    %439 = vmatpush1.msra.mxu0 0.0
    %440 = vmatprep.subr.mxu0 0.0
    %441 = vmatpush1.msra.mxu0 0.0
    %442 = vmatprep.subr.mxu0 0.0
    %443 = vmatpush1.msra.mxu0 0.0
    %444 = vmatprep.subr.mxu0 0.0
    %445 = vmatpush1.msra.mxu0 0.0
    %446 = vmatprep.subr.mxu0 0.0
    %447 = vmatpush1.msra.mxu0 0.0
    %448 = vmatprep.subr.mxu0 0.0
    %449 = vmatpush1.msra.mxu0 0.0
    %450 = vmatprep.subr.mxu0 0.0
    %451 = vmatpush1.msra.mxu0 0.0
    %452 = vmatprep.subr.mxu0 0.0
    %453 = vmatpush1.msra.mxu0 0.0
    %454 = vmatprep.subr.mxu0 0.0
    %455 = vmatpush1.msra.mxu0 0.0
    %456 = vmatprep.subr.mxu0 0.0
    %457 = vmatpush1.msra.mxu0 0.0
    %458 = vmatprep.subr.mxu0 0.0
    %459 = vmatpush1.msra.mxu0 0.0
    %460 = vmatprep.mubr.f32.mxu0 0.0
    %461 = vmatmul.mubr.f32.gmra.mrb[0].mxu0 %v343
    %v462 = vpop.f32.mrb[0].mxu0
    %v463 = vadd.f32 0.0, %v462
    %v464 = vpop.f32.mrb[0].mxu0
    %465 = vdwg.mxu0
    %v466 = vadd.f32 %v395, %v463
    %v467 = vtanh.pop %v466
    %s468 = sld [smem:[#allocation2 + $0x180]]
    %s469 = scalar_lea.vmem [#allocation6], %s468
    %v470 = vld [vmem:[%s469] sm:$0x1]
    %s471 = sld [smem:[#allocation2 + $0x181]]
    %s472 = scalar_lea.vmem [#allocation6], %s471
    %v473 = vld [vmem:[%s472] sm:$0x1]
    %s474 = sld [smem:[#allocation2 + $0x182]]
    %s475 = scalar_lea.vmem [#allocation6], %s474
    %v476 = vld [vmem:[%s475] sm:$0x1]
    %s477 = sld [smem:[#allocation2 + $0x183]]
    %s478 = scalar_lea.vmem [#allocation6], %s477
    %v479 = vld [vmem:[%s478] sm:$0x1]
    %s480 = sld [smem:[#allocation2 + $0x184]]
    %s481 = scalar_lea.vmem [#allocation6], %s480
    %v482 = vld [vmem:[%s481] sm:$0x1]
    %s483 = sld [smem:[#allocation2 + $0x185]]
    %s484 = scalar_lea.vmem [#allocation6], %s483
    %v485 = vld [vmem:[%s484] sm:$0x1]
    %s486 = sld [smem:[#allocation2 + $0x186]]
    %s487 = scalar_lea.vmem [#allocation6], %s486
    %v488 = vld [vmem:[%s487] sm:$0x1]
    %s489 = sld [smem:[#allocation2 + $0x187]]
    %s490 = scalar_lea.vmem [#allocation6], %s489
    %v491 = vld [vmem:[%s490] sm:$0x1]
    %v493 = vrot.slane %v473, 7
    %v496 = vrot.slane %v476, 6
    %v499 = vrot.slane %v479, 5
    %v502 = vrot.slane %v482, 4
    %v505 = vrot.slane %v485, 3
    %v508 = vrot.slane %v488, 2
    %v511 = vrot.slane %v491, 1
    %v513 = vsel %vm134, %v470, %v493
    %v514 = vsel %vm136, %v513, %v496
    %v515 = vsel %vm138, %v514, %v499
    %v516 = vsel %vm140, %v515, %v502
    %v517 = vsel %vm142, %v516, %v505
    %v518 = vsel %vm144, %v517, %v508
    %v519 = vsel %vm146, %v518, %v511
    %520 = vmatprep.subr.mxu0 0.0
    %521 = vmatpush1.msra.mxu0 %v73
    %522 = vmatprep.subr.mxu0 0.0
    %523 = vmatpush1.msra.mxu0 %v74
    %524 = vmatprep.subr.mxu0 0.0
    %525 = vmatpush1.msra.mxu0 %v75
    %526 = vmatprep.subr.mxu0 0.0
    %527 = vmatpush1.msra.mxu0 %v76
    %528 = vmatprep.subr.mxu0 0.0
    %529 = vmatpush1.msra.mxu0 %v77
    %530 = vmatprep.subr.mxu0 0.0
    %531 = vmatpush1.msra.mxu0 %v78
    %532 = vmatprep.subr.mxu0 0.0
    %533 = vmatpush1.msra.mxu0 %v79
    %534 = vmatprep.subr.mxu0 0.0
    %535 = vmatpush1.msra.mxu0 %v80
    %536 = vmatprep.subr.mxu0 0.0
    %537 = vmatpush1.msra.mxu0 %v81
    %538 = vmatprep.subr.mxu0 0.0
    %539 = vmatpush1.msra.mxu0 %v82
    %540 = vmatprep.subr.mxu0 0.0
    %541 = vmatpush1.msra.mxu0 %v83
    %542 = vmatprep.subr.mxu0 0.0
    %543 = vmatpush1.msra.mxu0 %v84
    %544 = vmatprep.subr.mxu0 0.0
    %545 = vmatpush1.msra.mxu0 %v85
    %546 = vmatprep.subr.mxu0 0.0
    %547 = vmatpush1.msra.mxu0 %v86
    %548 = vmatprep.subr.mxu0 0.0
    %549 = vmatpush1.msra.mxu0 %v87
    %550 = vmatprep.subr.mxu0 0.0
    %551 = vmatpush1.msra.mxu0 %v88
    %552 = vmatprep.subr.mxu0 0.0
    %553 = vmatpush1.msra.mxu0 0.0
    %554 = vmatprep.subr.mxu0 0.0
    %555 = vmatpush1.msra.mxu0 0.0
    %556 = vmatprep.subr.mxu0 0.0
    %557 = vmatpush1.msra.mxu0 0.0
    %558 = vmatprep.subr.mxu0 0.0
    %559 = vmatpush1.msra.mxu0 0.0
    %560 = vmatprep.subr.mxu0 0.0
    %561 = vmatpush1.msra.mxu0 0.0
    %562 = vmatprep.subr.mxu0 0.0
    %563 = vmatpush1.msra.mxu0 0.0
    %564 = vmatprep.subr.mxu0 0.0
    %565 = vmatpush1.msra.mxu0 0.0
    %566 = vmatprep.subr.mxu0 0.0
    %567 = vmatpush1.msra.mxu0 0.0
    %568 = vmatprep.subr.mxu0 0.0
    %569 = vmatpush1.msra.mxu0 0.0
    %570 = vmatprep.subr.mxu0 0.0
    %571 = vmatpush1.msra.mxu0 0.0
    %572 = vmatprep.subr.mxu0 0.0
    %573 = vmatpush1.msra.mxu0 0.0
    %574 = vmatprep.subr.mxu0 0.0
    %575 = vmatpush1.msra.mxu0 0.0
    %576 = vmatprep.subr.mxu0 0.0
    %577 = vmatpush1.msra.mxu0 0.0
    %578 = vmatprep.subr.mxu0 0.0
    %579 = vmatpush1.msra.mxu0 0.0
    %580 = vmatprep.subr.mxu0 0.0
    %581 = vmatpush1.msra.mxu0 0.0
    %582 = vmatprep.subr.mxu0 0.0
    %583 = vmatpush1.msra.mxu0 0.0
    %584 = vmatprep.mubr.f32.mxu0 0.0
    %585 = vmatmul.mubr.f32.gmra.mrb[0].mxu0 %v467
    %v586 = vpop.f32.mrb[0].mxu0
    %v587 = vadd.f32 0.0, %v586
    %v588 = vpop.f32.mrb[0].mxu0
    %589 = vdwg.mxu0
    %v590 = vadd.f32 %v519, %v587
    %v591 = vtanh.pop %v590
    %s592 = sld [smem:[#allocation2 + $0x200]]
    %s593 = scalar_lea.vmem [#allocation6], %s592
    %v594 = vld [vmem:[%s593] sm:$0x1]
    %s595 = sld [smem:[#allocation2 + $0x201]]
    %s596 = scalar_lea.vmem [#allocation6], %s595
    %v597 = vld [vmem:[%s596] sm:$0x1]
    %s598 = sld [smem:[#allocation2 + $0x202]]
    %s599 = scalar_lea.vmem [#allocation6], %s598
    %v600 = vld [vmem:[%s599] sm:$0x1]
    %s601 = sld [smem:[#allocation2 + $0x203]]
    %s602 = scalar_lea.vmem [#allocation6], %s601
    %v603 = vld [vmem:[%s602] sm:$0x1]
    %s604 = sld [smem:[#allocation2 + $0x204]]
    %s605 = scalar_lea.vmem [#allocation6], %s604
    %v606 = vld [vmem:[%s605] sm:$0x1]
    %s607 = sld [smem:[#allocation2 + $0x205]]
    %s608 = scalar_lea.vmem [#allocation6], %s607
    %v609 = vld [vmem:[%s608] sm:$0x1]
    %s610 = sld [smem:[#allocation2 + $0x206]]
    %s611 = scalar_lea.vmem [#allocation6], %s610
    %v612 = vld [vmem:[%s611] sm:$0x1]
    %s613 = sld [smem:[#allocation2 + $0x207]]
    %s614 = scalar_lea.vmem [#allocation6], %s613
    %v615 = vld [vmem:[%s614] sm:$0x1]
    %v617 = vrot.slane %v597, 7
    %v620 = vrot.slane %v600, 6
    %v623 = vrot.slane %v603, 5
    %v626 = vrot.slane %v606, 4
    %v629 = vrot.slane %v609, 3
    %v632 = vrot.slane %v612, 2
    %v635 = vrot.slane %v615, 1
    %v637 = vsel %vm134, %v594, %v617
    %v638 = vsel %vm136, %v637, %v620
    %v639 = vsel %vm138, %v638, %v623
    %v640 = vsel %vm140, %v639, %v626
    %v641 = vsel %vm142, %v640, %v629
    %v642 = vsel %vm144, %v641, %v632
    %v643 = vsel %vm146, %v642, %v635
    %644 = vmatprep.subr.mxu0 0.0
    %645 = vmatpush1.msra.mxu0 %v73
    %646 = vmatprep.subr.mxu0 0.0
    %647 = vmatpush1.msra.mxu0 %v74
    %648 = vmatprep.subr.mxu0 0.0
    %649 = vmatpush1.msra.mxu0 %v75
    %650 = vmatprep.subr.mxu0 0.0
    %651 = vmatpush1.msra.mxu0 %v76
    %652 = vmatprep.subr.mxu0 0.0
    %653 = vmatpush1.msra.mxu0 %v77
    %654 = vmatprep.subr.mxu0 0.0
    %655 = vmatpush1.msra.mxu0 %v78
    %656 = vmatprep.subr.mxu0 0.0
    %657 = vmatpush1.msra.mxu0 %v79
    %658 = vmatprep.subr.mxu0 0.0
    %659 = vmatpush1.msra.mxu0 %v80
    %660 = vmatprep.subr.mxu0 0.0
    %661 = vmatpush1.msra.mxu0 %v81
    %662 = vmatprep.subr.mxu0 0.0
    %663 = vmatpush1.msra.mxu0 %v82
    %664 = vmatprep.subr.mxu0 0.0
    %665 = vmatpush1.msra.mxu0 %v83
    %666 = vmatprep.subr.mxu0 0.0
    %667 = vmatpush1.msra.mxu0 %v84
    %668 = vmatprep.subr.mxu0 0.0
    %669 = vmatpush1.msra.mxu0 %v85
    %670 = vmatprep.subr.mxu0 0.0
    %671 = vmatpush1.msra.mxu0 %v86
    %672 = vmatprep.subr.mxu0 0.0
    %673 = vmatpush1.msra.mxu0 %v87
    %674 = vmatprep.subr.mxu0 0.0
    %675 = vmatpush1.msra.mxu0 %v88
    %676 = vmatprep.subr.mxu0 0.0
    %677 = vmatpush1.msra.mxu0 0.0
    %678 = vmatprep.subr.mxu0 0.0
    %679 = vmatpush1.msra.mxu0 0.0
    %680 = vmatprep.subr.mxu0 0.0
    %681 = vmatpush1.msra.mxu0 0.0
    %682 = vmatprep.subr.mxu0 0.0
    %683 = vmatpush1.msra.mxu0 0.0
    %684 = vmatprep.subr.mxu0 0.0
    %685 = vmatpush1.msra.mxu0 0.0
    %686 = vmatprep.subr.mxu0 0.0
    %687 = vmatpush1.msra.mxu0 0.0
    %688 = vmatprep.subr.mxu0 0.0
    %689 = vmatpush1.msra.mxu0 0.0
    %690 = vmatprep.subr.mxu0 0.0
    %691 = vmatpush1.msra.mxu0 0.0
    %692 = vmatprep.subr.mxu0 0.0
    %693 = vmatpush1.msra.mxu0 0.0
    %694 = vmatprep.subr.mxu0 0.0
    %695 = vmatpush1.msra.mxu0 0.0
    %696 = vmatprep.subr.mxu0 0.0
    %697 = vmatpush1.msra.mxu0 0.0
    %698 = vmatprep.subr.mxu0 0.0
    %699 = vmatpush1.msra.mxu0 0.0
    %700 = vmatprep.subr.mxu0 0.0
    %701 = vmatpush1.msra.mxu0 0.0
    %702 = vmatprep.subr.mxu0 0.0
    %703 = vmatpush1.msra.mxu0 0.0
    %704 = vmatprep.subr.mxu0 0.0
    %705 = vmatpush1.msra.mxu0 0.0
    %706 = vmatprep.subr.mxu0 0.0
    %707 = vmatpush1.msra.mxu0 0.0
    %708 = vmatprep.mubr.f32.mxu0 0.0
    %709 = vmatmul.mubr.f32.gmra.mrb[0].mxu0 %v591
    %v710 = vpop.f32.mrb[0].mxu0
    %v711 = vadd.f32 0.0, %v710
    %v712 = vpop.f32.mrb[0].mxu0
    %713 = vdwg.mxu0
    %v714 = vadd.f32 %v643, %v711
    %v715 = vtanh.pop %v714
    %s716 = sld [smem:[#allocation2 + $0x280]]
    %s717 = scalar_lea.vmem [#allocation6], %s716
    %v718 = vld [vmem:[%s717] sm:$0x1]
    %s719 = sld [smem:[#allocation2 + $0x281]]
    %s720 = scalar_lea.vmem [#allocation6], %s719
    %v721 = vld [vmem:[%s720] sm:$0x1]
    %s722 = sld [smem:[#allocation2 + $0x282]]
    %s723 = scalar_lea.vmem [#allocation6], %s722
    %v724 = vld [vmem:[%s723] sm:$0x1]
    %s725 = sld [smem:[#allocation2 + $0x283]]
    %s726 = scalar_lea.vmem [#allocation6], %s725
    %v727 = vld [vmem:[%s726] sm:$0x1]
    %s728 = sld [smem:[#allocation2 + $0x284]]
    %s729 = scalar_lea.vmem [#allocation6], %s728
    %v730 = vld [vmem:[%s729] sm:$0x1]
    %s731 = sld [smem:[#allocation2 + $0x285]]
    %s732 = scalar_lea.vmem [#allocation6], %s731
    %v733 = vld [vmem:[%s732] sm:$0x1]
    %s734 = sld [smem:[#allocation2 + $0x286]]
    %s735 = scalar_lea.vmem [#allocation6], %s734
    %v736 = vld [vmem:[%s735] sm:$0x1]
    %s737 = sld [smem:[#allocation2 + $0x287]]
    %s738 = scalar_lea.vmem [#allocation6], %s737
    %v739 = vld [vmem:[%s738] sm:$0x1]
    %v741 = vrot.slane %v721, 7
    %v744 = vrot.slane %v724, 6
    %v747 = vrot.slane %v727, 5
    %v750 = vrot.slane %v730, 4
    %v753 = vrot.slane %v733, 3
    %v756 = vrot.slane %v736, 2
    %v759 = vrot.slane %v739, 1
    %v761 = vsel %vm134, %v718, %v741
    %v762 = vsel %vm136, %v761, %v744
    %v763 = vsel %vm138, %v762, %v747
    %v764 = vsel %vm140, %v763, %v750
    %v765 = vsel %vm142, %v764, %v753
    %v766 = vsel %vm144, %v765, %v756
    %v767 = vsel %vm146, %v766, %v759
    %768 = vmatprep.subr.mxu0 0.0
    %769 = vmatpush1.msra.mxu0 %v73
    %770 = vmatprep.subr.mxu0 0.0
    %771 = vmatpush1.msra.mxu0 %v74
    %772 = vmatprep.subr.mxu0 0.0
    %773 = vmatpush1.msra.mxu0 %v75
    %774 = vmatprep.subr.mxu0 0.0
    %775 = vmatpush1.msra.mxu0 %v76
    %776 = vmatprep.subr.mxu0 0.0
    %777 = vmatpush1.msra.mxu0 %v77
    %778 = vmatprep.subr.mxu0 0.0
    %779 = vmatpush1.msra.mxu0 %v78
    %780 = vmatprep.subr.mxu0 0.0
    %781 = vmatpush1.msra.mxu0 %v79
    %782 = vmatprep.subr.mxu0 0.0
    %783 = vmatpush1.msra.mxu0 %v80
    %784 = vmatprep.subr.mxu0 0.0
    %785 = vmatpush1.msra.mxu0 %v81
    %786 = vmatprep.subr.mxu0 0.0
    %787 = vmatpush1.msra.mxu0 %v82
    %788 = vmatprep.subr.mxu0 0.0
    %789 = vmatpush1.msra.mxu0 %v83
    %790 = vmatprep.subr.mxu0 0.0
    %791 = vmatpush1.msra.mxu0 %v84
    %792 = vmatprep.subr.mxu0 0.0
    %793 = vmatpush1.msra.mxu0 %v85
    %794 = vmatprep.subr.mxu0 0.0
    %795 = vmatpush1.msra.mxu0 %v86
    %796 = vmatprep.subr.mxu0 0.0
    %797 = vmatpush1.msra.mxu0 %v87
    %798 = vmatprep.subr.mxu0 0.0
    %799 = vmatpush1.msra.mxu0 %v88
    %800 = vmatprep.subr.mxu0 0.0
    %801 = vmatpush1.msra.mxu0 0.0
    %802 = vmatprep.subr.mxu0 0.0
    %803 = vmatpush1.msra.mxu0 0.0
    %804 = vmatprep.subr.mxu0 0.0
    %805 = vmatpush1.msra.mxu0 0.0
    %806 = vmatprep.subr.mxu0 0.0
    %807 = vmatpush1.msra.mxu0 0.0
    %808 = vmatprep.subr.mxu0 0.0
    %809 = vmatpush1.msra.mxu0 0.0
    %810 = vmatprep.subr.mxu0 0.0
    %811 = vmatpush1.msra.mxu0 0.0
    %812 = vmatprep.subr.mxu0 0.0
    %813 = vmatpush1.msra.mxu0 0.0
    %814 = vmatprep.subr.mxu0 0.0
    %815 = vmatpush1.msra.mxu0 0.0
    %816 = vmatprep.subr.mxu0 0.0
    %817 = vmatpush1.msra.mxu0 0.0
    %818 = vmatprep.subr.mxu0 0.0
    %819 = vmatpush1.msra.mxu0 0.0
    %820 = vmatprep.subr.mxu0 0.0
    %821 = vmatpush1.msra.mxu0 0.0
    %822 = vmatprep.subr.mxu0 0.0
    %823 = vmatpush1.msra.mxu0 0.0
    %824 = vmatprep.subr.mxu0 0.0
    %825 = vmatpush1.msra.mxu0 0.0
    %826 = vmatprep.subr.mxu0 0.0
    %827 = vmatpush1.msra.mxu0 0.0
    %828 = vmatprep.subr.mxu0 0.0
    %829 = vmatpush1.msra.mxu0 0.0
    %830 = vmatprep.subr.mxu0 0.0
    %831 = vmatpush1.msra.mxu0 0.0
    %832 = vmatprep.mubr.f32.mxu0 0.0
    %833 = vmatmul.mubr.f32.gmra.mrb[0].mxu0 %v715
    %v834 = vpop.f32.mrb[0].mxu0
    %v835 = vadd.f32 0.0, %v834
    %v836 = vpop.f32.mrb[0].mxu0
    %837 = vdwg.mxu0
    %v838 = vadd.f32 %v767, %v835
    %v839 = vtanh.pop %v838
    %s840 = sld [smem:[#allocation2 + $0x300]]
    %s841 = scalar_lea.vmem [#allocation6], %s840
    %v842 = vld [vmem:[%s841] sm:$0x1]
    %s843 = sld [smem:[#allocation2 + $0x301]]
    %s844 = scalar_lea.vmem [#allocation6], %s843
    %v845 = vld [vmem:[%s844] sm:$0x1]
    %s846 = sld [smem:[#allocation2 + $0x302]]
    %s847 = scalar_lea.vmem [#allocation6], %s846
    %v848 = vld [vmem:[%s847] sm:$0x1]
    %s849 = sld [smem:[#allocation2 + $0x303]]
    %s850 = scalar_lea.vmem [#allocation6], %s849
    %v851 = vld [vmem:[%s850] sm:$0x1]
    %s852 = sld [smem:[#allocation2 + $0x304]]
    %s853 = scalar_lea.vmem [#allocation6], %s852
    %v854 = vld [vmem:[%s853] sm:$0x1]
    %s855 = sld [smem:[#allocation2 + $0x305]]
    %s856 = scalar_lea.vmem [#allocation6], %s855
    %v857 = vld [vmem:[%s856] sm:$0x1]
    %s858 = sld [smem:[#allocation2 + $0x306]]
    %s859 = scalar_lea.vmem [#allocation6], %s858
    %v860 = vld [vmem:[%s859] sm:$0x1]
    %s861 = sld [smem:[#allocation2 + $0x307]]
    %s862 = scalar_lea.vmem [#allocation6], %s861
    %v863 = vld [vmem:[%s862] sm:$0x1]
    %v865 = vrot.slane %v845, 7
    %v868 = vrot.slane %v848, 6
    %v871 = vrot.slane %v851, 5
    %v874 = vrot.slane %v854, 4
    %v877 = vrot.slane %v857, 3
    %v880 = vrot.slane %v860, 2
    %v883 = vrot.slane %v863, 1
    %v885 = vsel %vm134, %v842, %v865
    %v886 = vsel %vm136, %v885, %v868
    %v887 = vsel %vm138, %v886, %v871
    %v888 = vsel %vm140, %v887, %v874
    %v889 = vsel %vm142, %v888, %v877
    %v890 = vsel %vm144, %v889, %v880
    %v891 = vsel %vm146, %v890, %v883
    %892 = vmatprep.subr.mxu0 0.0
    %893 = vmatpush1.msra.mxu0 %v73
    %894 = vmatprep.subr.mxu0 0.0
    %895 = vmatpush1.msra.mxu0 %v74
    %896 = vmatprep.subr.mxu0 0.0
    %897 = vmatpush1.msra.mxu0 %v75
    %898 = vmatprep.subr.mxu0 0.0
    %899 = vmatpush1.msra.mxu0 %v76
    %900 = vmatprep.subr.mxu0 0.0
    %901 = vmatpush1.msra.mxu0 %v77
    %902 = vmatprep.subr.mxu0 0.0
    %903 = vmatpush1.msra.mxu0 %v78
    %904 = vmatprep.subr.mxu0 0.0
    %905 = vmatpush1.msra.mxu0 %v79
    %906 = vmatprep.subr.mxu0 0.0
    %907 = vmatpush1.msra.mxu0 %v80
    %908 = vmatprep.subr.mxu0 0.0
    %909 = vmatpush1.msra.mxu0 %v81
    %910 = vmatprep.subr.mxu0 0.0
    %911 = vmatpush1.msra.mxu0 %v82
    %912 = vmatprep.subr.mxu0 0.0
    %913 = vmatpush1.msra.mxu0 %v83
    %914 = vmatprep.subr.mxu0 0.0
    %915 = vmatpush1.msra.mxu0 %v84
    %916 = vmatprep.subr.mxu0 0.0
    %917 = vmatpush1.msra.mxu0 %v85
    %918 = vmatprep.subr.mxu0 0.0
    %919 = vmatpush1.msra.mxu0 %v86
    %920 = vmatprep.subr.mxu0 0.0
    %921 = vmatpush1.msra.mxu0 %v87
    %922 = vmatprep.subr.mxu0 0.0
    %923 = vmatpush1.msra.mxu0 %v88
    %924 = vmatprep.subr.mxu0 0.0
    %925 = vmatpush1.msra.mxu0 0.0
    %926 = vmatprep.subr.mxu0 0.0
    %927 = vmatpush1.msra.mxu0 0.0
    %928 = vmatprep.subr.mxu0 0.0
    %929 = vmatpush1.msra.mxu0 0.0
    %930 = vmatprep.subr.mxu0 0.0
    %931 = vmatpush1.msra.mxu0 0.0
    %932 = vmatprep.subr.mxu0 0.0
    %933 = vmatpush1.msra.mxu0 0.0
    %934 = vmatprep.subr.mxu0 0.0
    %935 = vmatpush1.msra.mxu0 0.0
    %936 = vmatprep.subr.mxu0 0.0
    %937 = vmatpush1.msra.mxu0 0.0
    %938 = vmatprep.subr.mxu0 0.0
    %939 = vmatpush1.msra.mxu0 0.0
    %940 = vmatprep.subr.mxu0 0.0
    %941 = vmatpush1.msra.mxu0 0.0
    %942 = vmatprep.subr.mxu0 0.0
    %943 = vmatpush1.msra.mxu0 0.0
    %944 = vmatprep.subr.mxu0 0.0
    %945 = vmatpush1.msra.mxu0 0.0
    %946 = vmatprep.subr.mxu0 0.0
    %947 = vmatpush1.msra.mxu0 0.0
    %948 = vmatprep.subr.mxu0 0.0
    %949 = vmatpush1.msra.mxu0 0.0
    %950 = vmatprep.subr.mxu0 0.0
    %951 = vmatpush1.msra.mxu0 0.0
    %952 = vmatprep.subr.mxu0 0.0
    %953 = vmatpush1.msra.mxu0 0.0
    %954 = vmatprep.subr.mxu0 0.0
    %955 = vmatpush1.msra.mxu0 0.0
    %956 = vmatprep.mubr.f32.mxu0 0.0
    %957 = vmatmul.mubr.f32.gmra.mrb[0].mxu0 %v839
    %v958 = vpop.f32.mrb[0].mxu0
    %v959 = vadd.f32 0.0, %v958
    %v960 = vpop.f32.mrb[0].mxu0
    %961 = vdwg.mxu0
    %v962 = vadd.f32 %v891, %v959
    %v963 = vtanh.pop %v962
    %s964 = sld [smem:[#allocation2 + $0x380]]
    %s965 = scalar_lea.vmem [#allocation6], %s964
    %v966 = vld [vmem:[%s965] sm:$0x1]
    %s967 = sld [smem:[#allocation2 + $0x381]]
    %s968 = scalar_lea.vmem [#allocation6], %s967
    %v969 = vld [vmem:[%s968] sm:$0x1]
    %s970 = sld [smem:[#allocation2 + $0x382]]
    %s971 = scalar_lea.vmem [#allocation6], %s970
    %v972 = vld [vmem:[%s971] sm:$0x1]
    %s973 = sld [smem:[#allocation2 + $0x383]]
    %s974 = scalar_lea.vmem [#allocation6], %s973
    %v975 = vld [vmem:[%s974] sm:$0x1]
    %s976 = sld [smem:[#allocation2 + $0x384]]
    %s977 = scalar_lea.vmem [#allocation6], %s976
    %v978 = vld [vmem:[%s977] sm:$0x1]
    %s979 = sld [smem:[#allocation2 + $0x385]]
    %s980 = scalar_lea.vmem [#allocation6], %s979
    %v981 = vld [vmem:[%s980] sm:$0x1]
    %s982 = sld [smem:[#allocation2 + $0x386]]
    %s983 = scalar_lea.vmem [#allocation6], %s982
    %v984 = vld [vmem:[%s983] sm:$0x1]
    %s985 = sld [smem:[#allocation2 + $0x387]]
    %s986 = scalar_lea.vmem [#allocation6], %s985
    %v987 = vld [vmem:[%s986] sm:$0x1]
    %v989 = vrot.slane %v969, 7
    %v992 = vrot.slane %v972, 6
    %v995 = vrot.slane %v975, 5
    %v998 = vrot.slane %v978, 4
    %v1001 = vrot.slane %v981, 3
    %v1004 = vrot.slane %v984, 2
    %v1007 = vrot.slane %v987, 1
    %v1009 = vsel %vm134, %v966, %v989
    %v1010 = vsel %vm136, %v1009, %v992
    %v1011 = vsel %vm138, %v1010, %v995
    %v1012 = vsel %vm140, %v1011, %v998
    %v1013 = vsel %vm142, %v1012, %v1001
    %v1014 = vsel %vm144, %v1013, %v1004
    %v1015 = vsel %vm146, %v1014, %v1007
    %1016 = vmatprep.subr.mxu0 0.0
    %1017 = vmatpush1.msra.mxu0 %v73
    %1018 = vmatprep.subr.mxu0 0.0
    %1019 = vmatpush1.msra.mxu0 %v74
    %1020 = vmatprep.subr.mxu0 0.0
    %1021 = vmatpush1.msra.mxu0 %v75
    %1022 = vmatprep.subr.mxu0 0.0
    %1023 = vmatpush1.msra.mxu0 %v76
    %1024 = vmatprep.subr.mxu0 0.0
    %1025 = vmatpush1.msra.mxu0 %v77
    %1026 = vmatprep.subr.mxu0 0.0
    %1027 = vmatpush1.msra.mxu0 %v78
    %1028 = vmatprep.subr.mxu0 0.0
    %1029 = vmatpush1.msra.mxu0 %v79
    %1030 = vmatprep.subr.mxu0 0.0
    %1031 = vmatpush1.msra.mxu0 %v80
    %1032 = vmatprep.subr.mxu0 0.0
    %1033 = vmatpush1.msra.mxu0 %v81
    %1034 = vmatprep.subr.mxu0 0.0
    %1035 = vmatpush1.msra.mxu0 %v82
    %1036 = vmatprep.subr.mxu0 0.0
    %1037 = vmatpush1.msra.mxu0 %v83
    %1038 = vmatprep.subr.mxu0 0.0
    %1039 = vmatpush1.msra.mxu0 %v84
    %1040 = vmatprep.subr.mxu0 0.0
    %1041 = vmatpush1.msra.mxu0 %v85
    %1042 = vmatprep.subr.mxu0 0.0
    %1043 = vmatpush1.msra.mxu0 %v86
    %1044 = vmatprep.subr.mxu0 0.0
    %1045 = vmatpush1.msra.mxu0 %v87
    %1046 = vmatprep.subr.mxu0 0.0
    %1047 = vmatpush1.msra.mxu0 %v88
    %1048 = vmatprep.subr.mxu0 0.0
    %1049 = vmatpush1.msra.mxu0 0.0
    %1050 = vmatprep.subr.mxu0 0.0
    %1051 = vmatpush1.msra.mxu0 0.0
    %1052 = vmatprep.subr.mxu0 0.0
    %1053 = vmatpush1.msra.mxu0 0.0
    %1054 = vmatprep.subr.mxu0 0.0
    %1055 = vmatpush1.msra.mxu0 0.0
    %1056 = vmatprep.subr.mxu0 0.0
    %1057 = vmatpush1.msra.mxu0 0.0
    %1058 = vmatprep.subr.mxu0 0.0
    %1059 = vmatpush1.msra.mxu0 0.0
    %1060 = vmatprep.subr.mxu0 0.0
    %1061 = vmatpush1.msra.mxu0 0.0
    %1062 = vmatprep.subr.mxu0 0.0
    %1063 = vmatpush1.msra.mxu0 0.0
    %1064 = vmatprep.subr.mxu0 0.0
    %1065 = vmatpush1.msra.mxu0 0.0
    %1066 = vmatprep.subr.mxu0 0.0
    %1067 = vmatpush1.msra.mxu0 0.0
    %1068 = vmatprep.subr.mxu0 0.0
    %1069 = vmatpush1.msra.mxu0 0.0
    %1070 = vmatprep.subr.mxu0 0.0
    %1071 = vmatpush1.msra.mxu0 0.0
    %1072 = vmatprep.subr.mxu0 0.0
    %1073 = vmatpush1.msra.mxu0 0.0
    %1074 = vmatprep.subr.mxu0 0.0
    %1075 = vmatpush1.msra.mxu0 0.0
    %1076 = vmatprep.subr.mxu0 0.0
    %1077 = vmatpush1.msra.mxu0 0.0
    %1078 = vmatprep.subr.mxu0 0.0
    %1079 = vmatpush1.msra.mxu0 0.0
    %1080 = vmatprep.mubr.f32.mxu0 0.0
    %1081 = vmatmul.mubr.f32.gmra.mrb[0].mxu0 %v963
    %v1082 = vpop.f32.mrb[0].mxu0
    %v1083 = vadd.f32 0.0, %v1082
    %v1084 = vpop.f32.mrb[0].mxu0
    %1085 = vdwg.mxu0
    %v1086 = vadd.f32 %v1015, %v1083
    %v1087 = vtanh.pop %v1086
    %v1088 = vld [vmem:[#allocation9] sm:$0xff]
    %v1089 = vld [vmem:[#allocation9 + $0x8] sm:$0xff]
    %v1090 = vld [vmem:[#allocation9 + $0x10] sm:$0xff]
    %v1091 = vld [vmem:[#allocation9 + $0x18] sm:$0xff]
    %v1092 = vld [vmem:[#allocation9 + $0x20] sm:$0xff]
    %v1093 = vld [vmem:[#allocation9 + $0x28] sm:$0xff]
    %v1094 = vld [vmem:[#allocation9 + $0x30] sm:$0xff]
    %v1095 = vld [vmem:[#allocation9 + $0x38] sm:$0xff]
    %v1096 = vld [vmem:[#allocation9 + $0x40] sm:$0xff]
    %v1097 = vld [vmem:[#allocation9 + $0x48] sm:$0xff]
    %v1098 = vld [vmem:[#allocation9 + $0x50] sm:$0xff]
    %v1099 = vld [vmem:[#allocation9 + $0x58] sm:$0xff]
    %v1100 = vld [vmem:[#allocation9 + $0x60] sm:$0xff]
    %v1101 = vld [vmem:[#allocation9 + $0x68] sm:$0xff]
    %v1102 = vld [vmem:[#allocation9 + $0x70] sm:$0xff]
    %v1103 = vld [vmem:[#allocation9 + $0x78] sm:$0xff]
    %v1104 = vld [vmem:[%s4] sm:$0x1]
    %v1106 = vlaneseq
    %v1107 = vshrl.u32 %v1106, 7
    %v1108 = vsub.s32 0, %v1107
    %v1109 = vrot.slane %v1104, %v1108
    %1111 = vmatprep.subr.mxu0 0.0
    %1112 = vmatpush1.msra.mxu0 %v1088
    %1113 = vmatprep.subr.mxu0 0.0
    %1114 = vmatpush1.msra.mxu0 %v1089
    %1115 = vmatprep.subr.mxu0 0.0
    %1116 = vmatpush1.msra.mxu0 %v1090
    %1117 = vmatprep.subr.mxu0 0.0
    %1118 = vmatpush1.msra.mxu0 %v1091
    %1119 = vmatprep.subr.mxu0 0.0
    %1120 = vmatpush1.msra.mxu0 %v1092
    %1121 = vmatprep.subr.mxu0 0.0
    %1122 = vmatpush1.msra.mxu0 %v1093
    %1123 = vmatprep.subr.mxu0 0.0
    %1124 = vmatpush1.msra.mxu0 %v1094
    %1125 = vmatprep.subr.mxu0 0.0
    %1126 = vmatpush1.msra.mxu0 %v1095
    %1127 = vmatprep.subr.mxu0 0.0
    %1128 = vmatpush1.msra.mxu0 %v1096
    %1129 = vmatprep.subr.mxu0 0.0
    %1130 = vmatpush1.msra.mxu0 %v1097
    %1131 = vmatprep.subr.mxu0 0.0
    %1132 = vmatpush1.msra.mxu0 %v1098
    %1133 = vmatprep.subr.mxu0 0.0
    %1134 = vmatpush1.msra.mxu0 %v1099
    %1135 = vmatprep.subr.mxu0 0.0
    %1136 = vmatpush1.msra.mxu0 %v1100
    %1137 = vmatprep.subr.mxu0 0.0
    %1138 = vmatpush1.msra.mxu0 %v1101
    %1139 = vmatprep.subr.mxu0 0.0
    %1140 = vmatpush1.msra.mxu0 %v1102
    %1141 = vmatprep.subr.mxu0 0.0
    %1142 = vmatpush1.msra.mxu0 %v1103
    %1143 = vmatprep.subr.mxu0 0.0
    %1144 = vmatpush1.msra.mxu0 0.0
    %1145 = vmatprep.subr.mxu0 0.0
    %1146 = vmatpush1.msra.mxu0 0.0
    %1147 = vmatprep.subr.mxu0 0.0
    %1148 = vmatpush1.msra.mxu0 0.0
    %1149 = vmatprep.subr.mxu0 0.0
    %1150 = vmatpush1.msra.mxu0 0.0
    %1151 = vmatprep.subr.mxu0 0.0
    %1152 = vmatpush1.msra.mxu0 0.0
    %1153 = vmatprep.subr.mxu0 0.0
    %1154 = vmatpush1.msra.mxu0 0.0
    %1155 = vmatprep.subr.mxu0 0.0
    %1156 = vmatpush1.msra.mxu0 0.0
    %1157 = vmatprep.subr.mxu0 0.0
    %1158 = vmatpush1.msra.mxu0 0.0
    %1159 = vmatprep.subr.mxu0 0.0
    %1160 = vmatpush1.msra.mxu0 0.0
    %1161 = vmatprep.subr.mxu0 0.0
    %1162 = vmatpush1.msra.mxu0 0.0
    %1163 = vmatprep.subr.mxu0 0.0
    %1164 = vmatpush1.msra.mxu0 0.0
    %1165 = vmatprep.subr.mxu0 0.0
    %1166 = vmatpush1.msra.mxu0 0.0
    %1167 = vmatprep.subr.mxu0 0.0
    %1168 = vmatpush1.msra.mxu0 0.0
    %1169 = vmatprep.subr.mxu0 0.0
    %1170 = vmatpush1.msra.mxu0 0.0
    %1171 = vmatprep.subr.mxu0 0.0
    %1172 = vmatpush1.msra.mxu0 0.0
    %1173 = vmatprep.subr.mxu0 0.0
    %1174 = vmatpush1.msra.mxu0 0.0
    %1175 = vmatprep.mubr.f32.mxu0 0.0
    %1176 = vmatmul.mubr.f32.gmra.mrb[0].mxu0 %v1087
    %v1177 = vpop.f32.mrb[0].mxu0
    %v1178 = vadd.f32 %v1109, %v1177
    %v1179 = vpop.f32.mrb[0].mxu0
    %1180 = vdwg.mxu0
    %1181 = vst [vmem:[#allocation10] sm:$0xff] %v1178
    // Predicated region
    $region38: #{tpu_custom_call.1} parent=1 // pred_check
      _
    $region39: #{tpu_custom_call.1} parent=1 // pred_check_branch
      %1183 = sbr.rel (0) target = $region41
    $region40: #{tpu_custom_call.1} parent=1 // pred_region
      %s1185 = ssub.s32 128, 128
      %1186 = vsyncadd [#allocation4], %s1185
      %s1188 = sshll.u32 [#allocation10], 4
      %s1189 = int_to_ptr.vmem [resolvable:$true] %s1188
      %1191 = dma.vmem_to_hbm [thread:$0]  %s1189, 128, %s5, [#allocation4]
    $region41: #{tpu_custom_call.1} parent=1 // pred_fallthru
      _
    // Predicated region
    $region42: #{tpu_custom_call.1} parent=1 // pred_check
      _
    $region43: #{tpu_custom_call.1} parent=1 // pred_check_branch
      %1193 = sbr.rel (0) target = $region45
    $region44: #{tpu_custom_call.1} parent=1 // pred_region
      %1194 = dma.done [#allocation4], 128
    $region45: #{tpu_custom_call.1} parent=1 // pred_fallthru
      _
    %1195 = vsyncpa [#allocation3], 1
    %1196 = vsyncpa [#allocation8], 1
    %1197 = vsyncpa [#allocation4], 1
    %1198 = vsyncpa [#allocation5], 1

</llo_original>
